<compile_context>
chip_gen: v7x
topology: tpu7x:2x2x1
jax: 0.10.0
libtpu: 0.0.40
codegen_flags: <defaults>
</compile_context>

<pallas_src>
import math

import numpy as np
import jax
import jax.numpy as jnp
from jax.experimental import pallas as pl
from jax.experimental.pallas import tpu as pltpu

# ---------------- configuration (GraphRelationLayer __init__ args) ----------------
K = 2               # number of hops
N_TYPE = 3
N_HEAD = 4
N_BASIS = 0         # n_basis == 0, diag_decompose == False branch of w_vs
IN_DIM = 32         # input_size == output_size
HID = 32            # hidden_size
OUT_DIM = 32
SENT_DIM = 32
ATT_DIM = 32
ATT_LAYER_NUM = 1
EPS = 1e-20
BS = 2
N_NODE = 8
TEMPERATURE = math.sqrt(HID)

ROWS = BS * N_NODE        # 16   packed rows (batch-major, node-minor)
NH = N_HEAD * HID         # 128  packed lane width (head, chan)
OUT_PAD = 128             # lane-padded output width for a dense store


def _gelu_exact(x):
    # matches torch.nn.GELU() default (erf-based)
    return 0.5 * x * (1.0 + jax.lax.erf(x * (1.0 / math.sqrt(2.0))))


# =============================== Pallas kernel ====================================
def grl_kernel(zp0_ref, uni_ref, aexp_ref, m_ref, pw_ref, scale_ref,
               qexp_ref, hp_ref, vh_ref, vz_ref, bias_ref, out_ref):
    uni = uni_ref[...]          # (16, 128) f32   uni_attn[b, j] expanded to rows/lanes
    aexp = aexp_ref[...]        # (16, 8, 128) bf16   aexp[b*8+n][m, (j,c)] = A[b,j,m,n]
    zp_bf = zp0_ref[...]        # (16, 128) bf16  packed X*start (broadcast over heads)

    z_all = []
    for t in range(K):
        # (trans head-mixing o per-head W): ONE batch-shared lane-dense MXU matmul.
        zw = jnp.dot(zp_bf, m_ref[t], preferred_element_type=jnp.float32)    # (16,128)
        zw = zw * uni                                                        # VPU scale

        # adjacency: zp[(b,m),(j,c)] = sum_n A[b,j,m,n] * zw[(b,n),(j,c)]
        # per-batch row blocks, unrolled over 8 source nodes, tree accumulation.
        blocks = []
        for b in range(BS):
            zw_b = zw[b * N_NODE:(b + 1) * N_NODE, :]                        # (8,128)
            terms = [aexp[b * N_NODE + n].astype(jnp.float32) * zw_b[n:n + 1, :]
                     for n in range(N_NODE)]
            while len(terms) > 1:                                            # tree reduce
                terms = [terms[i] + terms[i + 1] for i in range(0, len(terms), 2)]
            blocks.append(terms[0])
        zp = jnp.concatenate(blocks, axis=0)                                 # (16,128) f32
        zp_bf = zp.astype(jnp.bfloat16)

        # head-sum + W_pad (MXU), fused with the exact end/degree normalisation
        # scale (precomputed in f32 in the wrapper; no approx reciprocal near eps).
        zt = jnp.dot(zp_bf, pw_ref[t], preferred_element_type=jnp.float32)   # (16,32)
        z_all.append(zt * scale_ref[t])

    # ----- aggregator: softmax over the K hops (lane reductions + EUP only) -----
    qexp = qexp_ref[...]                                                     # (16,32)
    logits = [jnp.sum(z * qexp, axis=-1, keepdims=True) for z in z_all]      # K x (16,1)
    mx = logits[0]
    for t in range(1, K):
        mx = jnp.maximum(mx, logits[t])
    es = [jnp.exp(l - mx) for l in logits]
    tot = es[0]
    for t in range(1, K):
        tot = tot + es[t]
    inv = pl.reciprocal(tot, approx=True)          # denominator >= 1 -> approx is safe
    zagg = (es[0] * inv) * z_all[0]
    for t in range(1, K):
        zagg = zagg + (es[t] * inv) * z_all[t]                               # (16,32)

    # ----- output head: GELU(Vh(H) + Vz(Z) + b), zero-padded to 128 lanes -----
    pre = (jnp.dot(hp_ref[...], vh_ref[...], preferred_element_type=jnp.float32)
           + jnp.dot(zagg.astype(jnp.bfloat16), vz_ref[...],
                     preferred_element_type=jnp.float32)
           + bias_ref[...])                                                  # (16,128)
    out_ref[...] = _gelu_exact(pre).astype(out_ref.dtype)


def grl_pallas(packed):
    vmem = lambda: pl.BlockSpec(memory_space=pltpu.MemorySpace.VMEM)
    out = pl.pallas_call(
        grl_kernel,
        out_shape=jax.ShapeDtypeStruct((ROWS, OUT_PAD), jnp.float32),
        in_specs=[vmem() for _ in packed],
        out_specs=vmem(),
    )(*packed)
    # (batch*node, padded-out) -> (batch, node, out)
    return out[:, :OUT_DIM].reshape(BS, N_NODE, OUT_DIM)


# ============== plain-JAX glue: layout packing for the kernel (tiny) ==============
def pack_inputs(X, A, start_attn, end_attn, uni_attn, trans_attn, S_q, H, W, W_pad, p):
    f32, bf16 = jnp.float32, jnp.bfloat16
    A = A.astype(f32)

    # hop mixing: identity at t=0, trans_attn at t>0.  trans_scores is a broadcast
    # parameter, so trans_attn is identical across the batch -> batch-SHARED M[t].
    mix = jnp.concatenate(
        [jnp.eye(N_HEAD, dtype=f32)[None],
         jnp.broadcast_to(trans_attn[0][None], (K - 1, N_HEAD, N_HEAD))], axis=0)

    # combined hop weights: M[t][(i,c),(j,o)] = mix[t,i,j] * W[t,j,c,o]
    M = jnp.einsum('tij,tjco->ticjo', mix, W).reshape(K, NH, NH).astype(bf16)
    # head-sum + W_pad weights: PW[t][(j,c),o] = W_pad[t,c,o]  (head-sum folded in)
    PW = jnp.broadcast_to(W_pad[:, None], (K, N_HEAD, HID, HID)
                          ).reshape(K, NH, HID).astype(bf16)

    # uni_attn as a (rows, lanes) VPU scale: uni_exp[(b,n),(j,c)] = uni[b,j]
    uni_exp = jnp.broadcast_to(uni_attn[:, None, :, None],
                               (BS, N_NODE, N_HEAD, HID)).reshape(ROWS, NH)

    # adjacency expanded into the packed layout: aexp[b*8+n][m,(j,c)] = A[b,j,m,n]
    a_t = jnp.transpose(A, (0, 3, 2, 1))                       # (b, n, m, j)
    aexp = jnp.broadcast_to(a_t[..., None],
                            (BS, N_NODE, N_NODE, N_HEAD, HID)
                            ).reshape(ROWS, N_NODE, NH).astype(bf16)

    # initial packed state: zp0[(b,n),(j,c)] = X[b,n,c]*start_attn[b,n]  (all heads)
    xs = X * start_attn[:, :, None]
    zp0 = jnp.broadcast_to(xs[:, :, None, :],
                           (BS, N_NODE, N_HEAD, HID)).reshape(ROWS, NH).astype(bf16)

    # degree normalisation precomputed EXACTLY:
    # scale[t][(b,n),:] = end_attn[b,n] / (D_t[b,n] + eps), expanded to HID lanes.
    D = jnp.broadcast_to(start_attn[:, None, :], (BS, N_HEAD, N_NODE))
    scales = []
    for t in range(K):
        if t > 0:
            D = jnp.einsum('bin,bij->bjn', D, trans_attn)
        Dh = D * uni_attn[:, :, None]
        Dh = jnp.einsum('bjmn,bjn->bjm', A, Dh)
        Dt = Dh.sum(1) * end_attn                              # (b, n)
        sc = end_attn / (Dt + EPS)
        scales.append(jnp.broadcast_to(sc[:, :, None],
                                       (BS, N_NODE, HID)).reshape(ROWS, HID))
        D = Dh
    scale = jnp.stack(scales, axis=0)                          # (K, 16, HID) f32

    # aggregator query, pre-expanded: qexp[(b,n),o] = S_q[b,o] / temperature
    qexp = jnp.broadcast_to((S_q / TEMPERATURE)[:, None, :],
                            (BS, N_NODE, HID)).reshape(ROWS, HID)

    # output head (batch-shared, zero-padded to 128 output lanes -> dense store)
    hp = H.reshape(ROWS, IN_DIM).astype(bf16)
    vh = jnp.zeros((IN_DIM, OUT_PAD), f32).at[:, :OUT_DIM].set(p['vh_w'].T).astype(bf16)
    vz = jnp.zeros((HID, OUT_PAD), f32).at[:, :OUT_DIM].set(p['vz_w'].T).astype(bf16)
    bias = jnp.zeros((1, OUT_PAD), f32).at[0, :OUT_DIM].set(p['vh_b'] + p['vz_b'])

    return (zp0, uni_exp, aexp, M, PW, scale, qexp, hp, vh, vz, bias)


# ============================ plain-JAX glue (small) ==============================
def init_params(key):
    ks = jax.random.split(key, 24)
    p = {}
    # TypedLinear(input_size, hidden_size, n_type) == Linear(in, n_type*hidden) + type gather
    p['tt_w'] = jax.random.normal(ks[0], (N_TYPE * HID, IN_DIM)) * 0.05
    p['tt_b'] = jax.random.normal(ks[1], (N_TYPE * HID,)) * 0.05

    def mlp_params(k0, k1, k2, k3, n_out):
        return {'w0': jax.random.normal(k0, (ATT_DIM, SENT_DIM)) * 0.05,
                'b0': jax.random.normal(k1, (ATT_DIM,)) * 0.05,
                'ln_g': jnp.ones((ATT_DIM,)), 'ln_b': jnp.zeros((ATT_DIM,)),
                'w1': jax.random.normal(k2, (n_out, ATT_DIM)) * 0.05,
                'b1': jax.random.normal(k3, (n_out,)) * 0.05}

    p['start_mlp'] = mlp_params(ks[2], ks[3], ks[4], ks[5], N_TYPE)
    p['end_mlp'] = mlp_params(ks[6], ks[7], ks[8], ks[9], N_TYPE)
    p['uni_mlp'] = mlp_params(ks[10], ks[11], ks[12], ks[13], N_HEAD)
    p['trans_scores'] = jnp.zeros((N_HEAD * N_HEAD,))          # torch init: zeros
    # message passing weights (n_basis == 0, diag_decompose == False): uniform(-0.01, 0.01)
    p['w_vs'] = jax.random.uniform(ks[14], (K, N_HEAD + 1, HID, HID),
                                   minval=-0.01, maxval=0.01)
    # aggregator w_qs: normal(0, sqrt(2/(sent+hidden)))
    std = math.sqrt(2.0 / (SENT_DIM + HID))
    p['wqs_w'] = jax.random.normal(ks[15], (HID, SENT_DIM)) * std
    p['wqs_b'] = jax.random.normal(ks[16], (HID,)) * 0.05
    # output heads
    p['vh_w'] = jax.random.normal(ks[17], (OUT_DIM, IN_DIM)) * 0.05
    p['vh_b'] = jax.random.normal(ks[18], (OUT_DIM,)) * 0.05
    p['vz_w'] = jax.random.normal(ks[19], (OUT_DIM, HID)) * 0.05
    p['vz_b'] = jax.random.normal(ks[20], (OUT_DIM,)) * 0.05
    return p


def mlp_forward(x, mp):
    h = x @ mp['w0'].T + mp['b0']
    # dropout is identity in eval mode
    mu = jnp.mean(h, axis=-1, keepdims=True)
    var = jnp.mean((h - mu) ** 2, axis=-1, keepdims=True)
    h = (h - mu) / jnp.sqrt(var + 1e-5) * mp['ln_g'] + mp['ln_b']
    h = jax.nn.gelu(h, approximate=False)
    return h @ mp['w1'].T + mp['b1']


def typed_linear(H, node_type, p):
    y = jnp.einsum('bni,oi->bno', H, p['tt_w']) + p['tt_b']       # (bs, n_node, n_type*HID)
    y = y.reshape(BS * N_NODE, N_TYPE, HID)
    idx = jnp.arange(BS * N_NODE)
    return y[idx, node_type.reshape(-1)].reshape(BS, N_NODE, HID)


def path_attention(S, node_type, p):
    start_l = mlp_forward(S, p['start_mlp'])
    start_e = jnp.exp(start_l - jnp.max(start_l, axis=1, keepdims=True))
    start_attn = jnp.take_along_axis(start_e, node_type, axis=1)
    end_l = mlp_forward(S, p['end_mlp'])
    end_e = jnp.exp(end_l - jnp.max(end_l, axis=1, keepdims=True))
    end_attn = jnp.take_along_axis(end_e, node_type, axis=1)
    uni_l = mlp_forward(S, p['uni_mlp'])
    uni_attn = jnp.exp(uni_l - jnp.max(uni_l, axis=1, keepdims=True))
    trans_l = jnp.broadcast_to(p['trans_scores'][None], (BS, N_HEAD * N_HEAD))
    trans_attn = jnp.exp(trans_l - jnp.max(trans_l, axis=1, keepdims=True))
    return start_attn, end_attn, uni_attn, trans_attn.reshape(BS, N_HEAD, N_HEAD)


def build_message_passing_weights(p):
    w_vs = p['w_vs']
    W = w_vs[:, :-1]                   # (K, N_HEAD, HID, HID)
    Wi = w_vs[:, -1]                   # (K, HID, HID)
    wpad = [jnp.eye(HID, dtype=jnp.float32)]
    for t in range(K - 1):
        wpad = [Wi[K - 1 - t] @ wpad[0]] + wpad
    return W, jnp.stack(wpad, axis=0)  # (K, HID, HID)


def graph_relation_layer(S, H, A, node_type, p):
    X = typed_linear(H, node_type, p)
    start_attn, end_attn, uni_attn, trans_attn = path_attention(S, node_type, p)
    W, W_pad = build_message_passing_weights(p)
    S_q = S @ p['wqs_w'].T + p['wqs_b']
    packed = pack_inputs(X, A, start_attn, end_attn, uni_attn, trans_attn,
                         S_q, H, W, W_pad, p)
    out = grl_pallas(packed)
    # TODO(synk): trailing nn.Dropout(p=0.1) is identity in eval mode (no-op here).
    return out


# ========================== pure-JAX reference (check) ============================
def reference_forward(S, H, A, node_type, p):
    X = typed_linear(H, node_type, p)
    start_attn, end_attn, uni_attn, trans_attn = path_attention(S, node_type, p)
    W, W_pad = build_message_passing_weights(p)
    A = A.astype(jnp.float32)
    Z_all, D_all = [], []
    Z = X * start_attn[:, :, None]
    Zc = jnp.broadcast_to(Z[..., None], (BS, N_NODE, HID, N_HEAD))     # (b, n, c, head)
    for t in range(K):
        if t > 0:
            Zc = jnp.einsum('bnci,bij->bncj', Zc, trans_attn)
        Zh = jnp.einsum('bncj,jco->bjno', Zc, W[t])
        Zh = Zh * uni_attn[:, :, None, None]
        Zh = jnp.einsum('bjmn,bjno->bjmo', A, Zh)
        Zt = jnp.einsum('bno,op->bnp', Zh.sum(1), W_pad[t]) * end_attn[:, :, None]
        Z_all.append(Zt)
        Zc = Zh.transpose(0, 2, 3, 1)
    D = jnp.broadcast_to(start_attn[:, None, :], (BS, N_HEAD, N_NODE))
    for t in range(K):
        if t > 0:
            D = jnp.einsum('bin,bij->bjn', D, trans_attn)
        Dh = D * uni_attn[:, :, None]
        Dh = jnp.einsum('bjmn,bjn->bjm', A, Dh)
        D_all.append(Dh.sum(1) * end_attn)
        D = Dh
    Z_all = [z / (d[:, :, None] + EPS) for z, d in zip(Z_all, D_all)]
    Z_all = jnp.stack(Z_all, axis=2)                                   # (b, n, K, HID)
    S_q = S @ p['wqs_w'].T + p['wqs_b']
    attn = jnp.sum(S_q[:, None, None, :] * Z_all, axis=-1) / TEMPERATURE
    attn = jax.nn.softmax(attn, axis=2)
    Zagg = jnp.sum(attn[..., None] * Z_all, axis=2)
    pre = H @ p['vh_w'].T + p['vh_b'] + Zagg @ p['vz_w'].T + p['vz_b']
    return _gelu_exact(pre)


# ===================================== main =======================================
if __name__ == "__main__":
    key = jax.random.PRNGKey(0)
    kp, ks, kh, ka, kt = jax.random.split(key, 5)
    params = init_params(kp)
    S = jax.random.normal(ks, (BS, SENT_DIM), dtype=jnp.float32)
    H = jax.random.normal(kh, (BS, N_NODE, IN_DIM), dtype=jnp.float32)
    A = jax.random.bernoulli(ka, 0.4, (BS, N_HEAD, N_NODE, N_NODE)).astype(jnp.float32)
    node_type = jax.random.randint(kt, (BS, N_NODE), 0, N_TYPE)

    out = graph_relation_layer(S, H, A, node_type, params)
    out = jax.block_until_ready(out)

    ref = jax.block_until_ready(reference_forward(S, H, A, node_type, params))
    assert out.shape == (BS, N_NODE, OUT_DIM)
    assert np.all(np.isfinite(np.asarray(out)))
    np.testing.assert_allclose(np.asarray(out), np.asarray(ref), rtol=5e-2, atol=5e-3)
    print("KERNEL_OK")
</pallas_src>

<mosaic_0001>
module attributes {stable_mosaic.version = 11 : i64} {
  func.func @grl_kernel(%arg0: memref<16x128xbf16, #tpu.memory_space<vmem>>, %arg1: memref<16x128xf32, #tpu.memory_space<vmem>>, %arg2: memref<16x8x128xbf16, #tpu.memory_space<vmem>>, %arg3: memref<2x128x128xbf16, #tpu.memory_space<vmem>>, %arg4: memref<2x128x32xbf16, #tpu.memory_space<vmem>>, %arg5: memref<2x16x32xf32, #tpu.memory_space<vmem>>, %arg6: memref<16x32xf32, #tpu.memory_space<vmem>>, %arg7: memref<16x32xbf16, #tpu.memory_space<vmem>>, %arg8: memref<32x128xbf16, #tpu.memory_space<vmem>>, %arg9: memref<32x128xbf16, #tpu.memory_space<vmem>>, %arg10: memref<1x128xf32, #tpu.memory_space<vmem>>, %arg11: memref<16x128xf32, #tpu.memory_space<vmem>>) attributes {dimension_semantics = [], scalar_prefetch = 0 : i64, scratch_operands = 0 : i64, tpu.core_type = #tpu.core_type<tc>} {
    %c0 = arith.constant 0 : index
    %c0_0 = arith.constant 0 : index
    %0 = vector.load %arg1[%c0, %c0_0] : memref<16x128xf32, #tpu.memory_space<vmem>>, vector<16x128xf32>
    %c0_1 = arith.constant 0 : index
    %c0_2 = arith.constant 0 : index
    %c0_3 = arith.constant 0 : index
    %1 = vector.load %arg2[%c0_1, %c0_2, %c0_3] : memref<16x8x128xbf16, #tpu.memory_space<vmem>>, vector<16x8x128xbf16>
    %c0_4 = arith.constant 0 : index
    %c0_5 = arith.constant 0 : index
    %2 = vector.load %arg0[%c0_4, %c0_5] : memref<16x128xbf16, #tpu.memory_space<vmem>>, vector<16x128xbf16>
    %c0_6 = arith.constant 0 : index
    %c0_7 = arith.constant 0 : index
    %c0_8 = arith.constant 0 : index
    %3 = vector.load %arg3[%c0_6, %c0_7, %c0_8] : memref<2x128x128xbf16, #tpu.memory_space<vmem>>, vector<1x128x128xbf16>
    %4 = vector.shape_cast %3 : vector<1x128x128xbf16> to vector<128x128xbf16>
    %cst = arith.constant dense<0.000000e+00> : vector<16x128xf32>
    %5 = tpu.matmul %2, %4, %cst {dimension_numbers = #tpu.dot_dimension_numbers<[1], [0], [0], [1], [0, 0, 1, 1], [], []>} : vector<16x128xbf16>, vector<128x128xbf16>, vector<16x128xf32> -> vector<16x128xf32>
    %6 = arith.mulf %5, %0 : vector<16x128xf32>
    %7 = vector.extract_strided_slice %6 {offsets = [0, 0], sizes = [8, 128], strides = [1, 1]} : vector<16x128xf32> to vector<8x128xf32>
    %8 = vector.extract_strided_slice %1 {offsets = [0, 0, 0], sizes = [1, 8, 128], strides = [1, 1, 1]} : vector<16x8x128xbf16> to vector<1x8x128xbf16>
    %9 = vector.shape_cast %8 : vector<1x8x128xbf16> to vector<8x128xbf16>
    %10 = arith.extf %9 : vector<8x128xbf16> to vector<8x128xf32>
    %11 = vector.extract_strided_slice %7 {offsets = [0, 0], sizes = [1, 128], strides = [1, 1]} : vector<8x128xf32> to vector<1x128xf32>
    %12 = vector.broadcast %11 : vector<1x128xf32> to vector<8x128xf32>
    %13 = arith.mulf %10, %12 : vector<8x128xf32>
    %14 = vector.extract_strided_slice %1 {offsets = [1, 0, 0], sizes = [1, 8, 128], strides = [1, 1, 1]} : vector<16x8x128xbf16> to vector<1x8x128xbf16>
    %15 = vector.shape_cast %14 : vector<1x8x128xbf16> to vector<8x128xbf16>
    %16 = arith.extf %15 : vector<8x128xbf16> to vector<8x128xf32>
    %17 = vector.extract_strided_slice %7 {offsets = [1, 0], sizes = [1, 128], strides = [1, 1]} : vector<8x128xf32> to vector<1x128xf32>
    %18 = vector.broadcast %17 : vector<1x128xf32> to vector<8x128xf32>
    %19 = arith.mulf %16, %18 : vector<8x128xf32>
    %20 = vector.extract_strided_slice %1 {offsets = [2, 0, 0], sizes = [1, 8, 128], strides = [1, 1, 1]} : vector<16x8x128xbf16> to vector<1x8x128xbf16>
    %21 = vector.shape_cast %20 : vector<1x8x128xbf16> to vector<8x128xbf16>
    %22 = arith.extf %21 : vector<8x128xbf16> to vector<8x128xf32>
    %23 = vector.extract_strided_slice %7 {offsets = [2, 0], sizes = [1, 128], strides = [1, 1]} : vector<8x128xf32> to vector<1x128xf32>
    %24 = vector.broadcast %23 : vector<1x128xf32> to vector<8x128xf32>
    %25 = arith.mulf %22, %24 : vector<8x128xf32>
    %26 = vector.extract_strided_slice %1 {offsets = [3, 0, 0], sizes = [1, 8, 128], strides = [1, 1, 1]} : vector<16x8x128xbf16> to vector<1x8x128xbf16>
    %27 = vector.shape_cast %26 : vector<1x8x128xbf16> to vector<8x128xbf16>
    %28 = arith.extf %27 : vector<8x128xbf16> to vector<8x128xf32>
    %29 = vector.extract_strided_slice %7 {offsets = [3, 0], sizes = [1, 128], strides = [1, 1]} : vector<8x128xf32> to vector<1x128xf32>
    %30 = vector.broadcast %29 : vector<1x128xf32> to vector<8x128xf32>
    %31 = arith.mulf %28, %30 : vector<8x128xf32>
    %32 = vector.extract_strided_slice %1 {offsets = [4, 0, 0], sizes = [1, 8, 128], strides = [1, 1, 1]} : vector<16x8x128xbf16> to vector<1x8x128xbf16>
    %33 = vector.shape_cast %32 : vector<1x8x128xbf16> to vector<8x128xbf16>
    %34 = arith.extf %33 : vector<8x128xbf16> to vector<8x128xf32>
    %35 = vector.extract_strided_slice %7 {offsets = [4, 0], sizes = [1, 128], strides = [1, 1]} : vector<8x128xf32> to vector<1x128xf32>
    %36 = vector.broadcast %35 : vector<1x128xf32> to vector<8x128xf32>
    %37 = arith.mulf %34, %36 : vector<8x128xf32>
    %38 = vector.extract_strided_slice %1 {offsets = [5, 0, 0], sizes = [1, 8, 128], strides = [1, 1, 1]} : vector<16x8x128xbf16> to vector<1x8x128xbf16>
    %39 = vector.shape_cast %38 : vector<1x8x128xbf16> to vector<8x128xbf16>
    %40 = arith.extf %39 : vector<8x128xbf16> to vector<8x128xf32>
    %41 = vector.extract_strided_slice %7 {offsets = [5, 0], sizes = [1, 128], strides = [1, 1]} : vector<8x128xf32> to vector<1x128xf32>
    %42 = vector.broadcast %41 : vector<1x128xf32> to vector<8x128xf32>
    %43 = arith.mulf %40, %42 : vector<8x128xf32>
    %44 = vector.extract_strided_slice %1 {offsets = [6, 0, 0], sizes = [1, 8, 128], strides = [1, 1, 1]} : vector<16x8x128xbf16> to vector<1x8x128xbf16>
    %45 = vector.shape_cast %44 : vector<1x8x128xbf16> to vector<8x128xbf16>
    %46 = arith.extf %45 : vector<8x128xbf16> to vector<8x128xf32>
    %47 = vector.extract_strided_slice %7 {offsets = [6, 0], sizes = [1, 128], strides = [1, 1]} : vector<8x128xf32> to vector<1x128xf32>
    %48 = vector.broadcast %47 : vector<1x128xf32> to vector<8x128xf32>
    %49 = arith.mulf %46, %48 : vector<8x128xf32>
    %50 = vector.extract_strided_slice %1 {offsets = [7, 0, 0], sizes = [1, 8, 128], strides = [1, 1, 1]} : vector<16x8x128xbf16> to vector<1x8x128xbf16>
    %51 = vector.shape_cast %50 : vector<1x8x128xbf16> to vector<8x128xbf16>
    %52 = arith.extf %51 : vector<8x128xbf16> to vector<8x128xf32>
    %53 = vector.extract_strided_slice %7 {offsets = [7, 0], sizes = [1, 128], strides = [1, 1]} : vector<8x128xf32> to vector<1x128xf32>
    %54 = vector.broadcast %53 : vector<1x128xf32> to vector<8x128xf32>
    %55 = arith.mulf %52, %54 : vector<8x128xf32>
    %56 = arith.addf %13, %19 : vector<8x128xf32>
    %57 = arith.addf %25, %31 : vector<8x128xf32>
    %58 = arith.addf %37, %43 : vector<8x128xf32>
    %59 = arith.addf %49, %55 : vector<8x128xf32>
    %60 = arith.addf %56, %57 : vector<8x128xf32>
    %61 = arith.addf %58, %59 : vector<8x128xf32>
    %62 = arith.addf %60, %61 : vector<8x128xf32>
    %63 = vector.extract_strided_slice %6 {offsets = [8, 0], sizes = [8, 128], strides = [1, 1]} : vector<16x128xf32> to vector<8x128xf32>
    %64 = vector.extract_strided_slice %1 {offsets = [8, 0, 0], sizes = [1, 8, 128], strides = [1, 1, 1]} : vector<16x8x128xbf16> to vector<1x8x128xbf16>
    %65 = vector.shape_cast %64 : vector<1x8x128xbf16> to vector<8x128xbf16>
    %66 = arith.extf %65 : vector<8x128xbf16> to vector<8x128xf32>
    %67 = vector.extract_strided_slice %63 {offsets = [0, 0], sizes = [1, 128], strides = [1, 1]} : vector<8x128xf32> to vector<1x128xf32>
    %68 = vector.broadcast %67 : vector<1x128xf32> to vector<8x128xf32>
    %69 = arith.mulf %66, %68 : vector<8x128xf32>
    %70 = vector.extract_strided_slice %1 {offsets = [9, 0, 0], sizes = [1, 8, 128], strides = [1, 1, 1]} : vector<16x8x128xbf16> to vector<1x8x128xbf16>
    %71 = vector.shape_cast %70 : vector<1x8x128xbf16> to vector<8x128xbf16>
    %72 = arith.extf %71 : vector<8x128xbf16> to vector<8x128xf32>
    %73 = vector.extract_strided_slice %63 {offsets = [1, 0], sizes = [1, 128], strides = [1, 1]} : vector<8x128xf32> to vector<1x128xf32>
    %74 = vector.broadcast %73 : vector<1x128xf32> to vector<8x128xf32>
    %75 = arith.mulf %72, %74 : vector<8x128xf32>
    %76 = vector.extract_strided_slice %1 {offsets = [10, 0, 0], sizes = [1, 8, 128], strides = [1, 1, 1]} : vector<16x8x128xbf16> to vector<1x8x128xbf16>
    %77 = vector.shape_cast %76 : vector<1x8x128xbf16> to vector<8x128xbf16>
    %78 = arith.extf %77 : vector<8x128xbf16> to vector<8x128xf32>
    %79 = vector.extract_strided_slice %63 {offsets = [2, 0], sizes = [1, 128], strides = [1, 1]} : vector<8x128xf32> to vector<1x128xf32>
    %80 = vector.broadcast %79 : vector<1x128xf32> to vector<8x128xf32>
    %81 = arith.mulf %78, %80 : vector<8x128xf32>
    %82 = vector.extract_strided_slice %1 {offsets = [11, 0, 0], sizes = [1, 8, 128], strides = [1, 1, 1]} : vector<16x8x128xbf16> to vector<1x8x128xbf16>
    %83 = vector.shape_cast %82 : vector<1x8x128xbf16> to vector<8x128xbf16>
    %84 = arith.extf %83 : vector<8x128xbf16> to vector<8x128xf32>
    %85 = vector.extract_strided_slice %63 {offsets = [3, 0], sizes = [1, 128], strides = [1, 1]} : vector<8x128xf32> to vector<1x128xf32>
    %86 = vector.broadcast %85 : vector<1x128xf32> to vector<8x128xf32>
    %87 = arith.mulf %84, %86 : vector<8x128xf32>
    %88 = vector.extract_strided_slice %1 {offsets = [12, 0, 0], sizes = [1, 8, 128], strides = [1, 1, 1]} : vector<16x8x128xbf16> to vector<1x8x128xbf16>
    %89 = vector.shape_cast %88 : vector<1x8x128xbf16> to vector<8x128xbf16>
    %90 = arith.extf %89 : vector<8x128xbf16> to vector<8x128xf32>
    %91 = vector.extract_strided_slice %63 {offsets = [4, 0], sizes = [1, 128], strides = [1, 1]} : vector<8x128xf32> to vector<1x128xf32>
    %92 = vector.broadcast %91 : vector<1x128xf32> to vector<8x128xf32>
    %93 = arith.mulf %90, %92 : vector<8x128xf32>
    %94 = vector.extract_strided_slice %1 {offsets = [13, 0, 0], sizes = [1, 8, 128], strides = [1, 1, 1]} : vector<16x8x128xbf16> to vector<1x8x128xbf16>
    %95 = vector.shape_cast %94 : vector<1x8x128xbf16> to vector<8x128xbf16>
    %96 = arith.extf %95 : vector<8x128xbf16> to vector<8x128xf32>
    %97 = vector.extract_strided_slice %63 {offsets = [5, 0], sizes = [1, 128], strides = [1, 1]} : vector<8x128xf32> to vector<1x128xf32>
    %98 = vector.broadcast %97 : vector<1x128xf32> to vector<8x128xf32>
    %99 = arith.mulf %96, %98 : vector<8x128xf32>
    %100 = vector.extract_strided_slice %1 {offsets = [14, 0, 0], sizes = [1, 8, 128], strides = [1, 1, 1]} : vector<16x8x128xbf16> to vector<1x8x128xbf16>
    %101 = vector.shape_cast %100 : vector<1x8x128xbf16> to vector<8x128xbf16>
    %102 = arith.extf %101 : vector<8x128xbf16> to vector<8x128xf32>
    %103 = vector.extract_strided_slice %63 {offsets = [6, 0], sizes = [1, 128], strides = [1, 1]} : vector<8x128xf32> to vector<1x128xf32>
    %104 = vector.broadcast %103 : vector<1x128xf32> to vector<8x128xf32>
    %105 = arith.mulf %102, %104 : vector<8x128xf32>
    %106 = vector.extract_strided_slice %1 {offsets = [15, 0, 0], sizes = [1, 8, 128], strides = [1, 1, 1]} : vector<16x8x128xbf16> to vector<1x8x128xbf16>
    %107 = vector.shape_cast %106 : vector<1x8x128xbf16> to vector<8x128xbf16>
    %108 = arith.extf %107 : vector<8x128xbf16> to vector<8x128xf32>
    %109 = vector.extract_strided_slice %63 {offsets = [7, 0], sizes = [1, 128], strides = [1, 1]} : vector<8x128xf32> to vector<1x128xf32>
    %110 = vector.broadcast %109 : vector<1x128xf32> to vector<8x128xf32>
    %111 = arith.mulf %108, %110 : vector<8x128xf32>
    %112 = arith.addf %69, %75 : vector<8x128xf32>
    %113 = arith.addf %81, %87 : vector<8x128xf32>
    %114 = arith.addf %93, %99 : vector<8x128xf32>
    %115 = arith.addf %105, %111 : vector<8x128xf32>
    %116 = arith.addf %112, %113 : vector<8x128xf32>
    %117 = arith.addf %114, %115 : vector<8x128xf32>
    %118 = arith.addf %116, %117 : vector<8x128xf32>
    %119 = tpu.concatenate %62, %118 in 0 : vector<8x128xf32>, vector<8x128xf32> -> vector<16x128xf32>
    %120 = arith.truncf %119 : vector<16x128xf32> to vector<16x128xbf16>
    %c0_9 = arith.constant 0 : index
    %c0_10 = arith.constant 0 : index
    %c0_11 = arith.constant 0 : index
    %121 = vector.load %arg4[%c0_9, %c0_10, %c0_11] : memref<2x128x32xbf16, #tpu.memory_space<vmem>>, vector<1x128x32xbf16>
    %122 = vector.shape_cast %121 : vector<1x128x32xbf16> to vector<128x32xbf16>
    %cst_12 = arith.constant dense<0.000000e+00> : vector<16x32xf32>
    %123 = tpu.matmul %120, %122, %cst_12 {dimension_numbers = #tpu.dot_dimension_numbers<[1], [0], [0], [1], [0, 0, 1, 1], [], []>} : vector<16x128xbf16>, vector<128x32xbf16>, vector<16x32xf32> -> vector<16x32xf32>
    %c0_13 = arith.constant 0 : index
    %c0_14 = arith.constant 0 : index
    %c0_15 = arith.constant 0 : index
    %124 = vector.load %arg5[%c0_13, %c0_14, %c0_15] : memref<2x16x32xf32, #tpu.memory_space<vmem>>, vector<1x16x32xf32>
    %125 = vector.shape_cast %124 : vector<1x16x32xf32> to vector<16x32xf32>
    %126 = arith.mulf %123, %125 : vector<16x32xf32>
    %c1 = arith.constant 1 : index
    %c0_16 = arith.constant 0 : index
    %c0_17 = arith.constant 0 : index
    %127 = vector.load %arg3[%c1, %c0_16, %c0_17] : memref<2x128x128xbf16, #tpu.memory_space<vmem>>, vector<1x128x128xbf16>
    %128 = vector.shape_cast %127 : vector<1x128x128xbf16> to vector<128x128xbf16>
    %cst_18 = arith.constant dense<0.000000e+00> : vector<16x128xf32>
    %129 = tpu.matmul %120, %128, %cst_18 {dimension_numbers = #tpu.dot_dimension_numbers<[1], [0], [0], [1], [0, 0, 1, 1], [], []>} : vector<16x128xbf16>, vector<128x128xbf16>, vector<16x128xf32> -> vector<16x128xf32>
    %130 = arith.mulf %129, %0 : vector<16x128xf32>
    %131 = vector.extract_strided_slice %130 {offsets = [0, 0], sizes = [8, 128], strides = [1, 1]} : vector<16x128xf32> to vector<8x128xf32>
    %132 = vector.extract_strided_slice %1 {offsets = [0, 0, 0], sizes = [1, 8, 128], strides = [1, 1, 1]} : vector<16x8x128xbf16> to vector<1x8x128xbf16>
    %133 = vector.shape_cast %132 : vector<1x8x128xbf16> to vector<8x128xbf16>
    %134 = arith.extf %133 : vector<8x128xbf16> to vector<8x128xf32>
    %135 = vector.extract_strided_slice %131 {offsets = [0, 0], sizes = [1, 128], strides = [1, 1]} : vector<8x128xf32> to vector<1x128xf32>
    %136 = vector.broadcast %135 : vector<1x128xf32> to vector<8x128xf32>
    %137 = arith.mulf %134, %136 : vector<8x128xf32>
    %138 = vector.extract_strided_slice %1 {offsets = [1, 0, 0], sizes = [1, 8, 128], strides = [1, 1, 1]} : vector<16x8x128xbf16> to vector<1x8x128xbf16>
    %139 = vector.shape_cast %138 : vector<1x8x128xbf16> to vector<8x128xbf16>
    %140 = arith.extf %139 : vector<8x128xbf16> to vector<8x128xf32>
    %141 = vector.extract_strided_slice %131 {offsets = [1, 0], sizes = [1, 128], strides = [1, 1]} : vector<8x128xf32> to vector<1x128xf32>
    %142 = vector.broadcast %141 : vector<1x128xf32> to vector<8x128xf32>
    %143 = arith.mulf %140, %142 : vector<8x128xf32>
    %144 = vector.extract_strided_slice %1 {offsets = [2, 0, 0], sizes = [1, 8, 128], strides = [1, 1, 1]} : vector<16x8x128xbf16> to vector<1x8x128xbf16>
    %145 = vector.shape_cast %144 : vector<1x8x128xbf16> to vector<8x128xbf16>
    %146 = arith.extf %145 : vector<8x128xbf16> to vector<8x128xf32>
    %147 = vector.extract_strided_slice %131 {offsets = [2, 0], sizes = [1, 128], strides = [1, 1]} : vector<8x128xf32> to vector<1x128xf32>
    %148 = vector.broadcast %147 : vector<1x128xf32> to vector<8x128xf32>
    %149 = arith.mulf %146, %148 : vector<8x128xf32>
    %150 = vector.extract_strided_slice %1 {offsets = [3, 0, 0], sizes = [1, 8, 128], strides = [1, 1, 1]} : vector<16x8x128xbf16> to vector<1x8x128xbf16>
    %151 = vector.shape_cast %150 : vector<1x8x128xbf16> to vector<8x128xbf16>
    %152 = arith.extf %151 : vector<8x128xbf16> to vector<8x128xf32>
    %153 = vector.extract_strided_slice %131 {offsets = [3, 0], sizes = [1, 128], strides = [1, 1]} : vector<8x128xf32> to vector<1x128xf32>
    %154 = vector.broadcast %153 : vector<1x128xf32> to vector<8x128xf32>
    %155 = arith.mulf %152, %154 : vector<8x128xf32>
    %156 = vector.extract_strided_slice %1 {offsets = [4, 0, 0], sizes = [1, 8, 128], strides = [1, 1, 1]} : vector<16x8x128xbf16> to vector<1x8x128xbf16>
    %157 = vector.shape_cast %156 : vector<1x8x128xbf16> to vector<8x128xbf16>
    %158 = arith.extf %157 : vector<8x128xbf16> to vector<8x128xf32>
    %159 = vector.extract_strided_slice %131 {offsets = [4, 0], sizes = [1, 128], strides = [1, 1]} : vector<8x128xf32> to vector<1x128xf32>
    %160 = vector.broadcast %159 : vector<1x128xf32> to vector<8x128xf32>
    %161 = arith.mulf %158, %160 : vector<8x128xf32>
    %162 = vector.extract_strided_slice %1 {offsets = [5, 0, 0], sizes = [1, 8, 128], strides = [1, 1, 1]} : vector<16x8x128xbf16> to vector<1x8x128xbf16>
    %163 = vector.shape_cast %162 : vector<1x8x128xbf16> to vector<8x128xbf16>
    %164 = arith.extf %163 : vector<8x128xbf16> to vector<8x128xf32>
    %165 = vector.extract_strided_slice %131 {offsets = [5, 0], sizes = [1, 128], strides = [1, 1]} : vector<8x128xf32> to vector<1x128xf32>
    %166 = vector.broadcast %165 : vector<1x128xf32> to vector<8x128xf32>
    %167 = arith.mulf %164, %166 : vector<8x128xf32>
    %168 = vector.extract_strided_slice %1 {offsets = [6, 0, 0], sizes = [1, 8, 128], strides = [1, 1, 1]} : vector<16x8x128xbf16> to vector<1x8x128xbf16>
    %169 = vector.shape_cast %168 : vector<1x8x128xbf16> to vector<8x128xbf16>
    %170 = arith.extf %169 : vector<8x128xbf16> to vector<8x128xf32>
    %171 = vector.extract_strided_slice %131 {offsets = [6, 0], sizes = [1, 128], strides = [1, 1]} : vector<8x128xf32> to vector<1x128xf32>
    %172 = vector.broadcast %171 : vector<1x128xf32> to vector<8x128xf32>
    %173 = arith.mulf %170, %172 : vector<8x128xf32>
    %174 = vector.extract_strided_slice %1 {offsets = [7, 0, 0], sizes = [1, 8, 128], strides = [1, 1, 1]} : vector<16x8x128xbf16> to vector<1x8x128xbf16>
    %175 = vector.shape_cast %174 : vector<1x8x128xbf16> to vector<8x128xbf16>
    %176 = arith.extf %175 : vector<8x128xbf16> to vector<8x128xf32>
    %177 = vector.extract_strided_slice %131 {offsets = [7, 0], sizes = [1, 128], strides = [1, 1]} : vector<8x128xf32> to vector<1x128xf32>
    %178 = vector.broadcast %177 : vector<1x128xf32> to vector<8x128xf32>
    %179 = arith.mulf %176, %178 : vector<8x128xf32>
    %180 = arith.addf %137, %143 : vector<8x128xf32>
    %181 = arith.addf %149, %155 : vector<8x128xf32>
    %182 = arith.addf %161, %167 : vector<8x128xf32>
    %183 = arith.addf %173, %179 : vector<8x128xf32>
    %184 = arith.addf %180, %181 : vector<8x128xf32>
    %185 = arith.addf %182, %183 : vector<8x128xf32>
    %186 = arith.addf %184, %185 : vector<8x128xf32>
    %187 = vector.extract_strided_slice %130 {offsets = [8, 0], sizes = [8, 128], strides = [1, 1]} : vector<16x128xf32> to vector<8x128xf32>
    %188 = vector.extract_strided_slice %1 {offsets = [8, 0, 0], sizes = [1, 8, 128], strides = [1, 1, 1]} : vector<16x8x128xbf16> to vector<1x8x128xbf16>
    %189 = vector.shape_cast %188 : vector<1x8x128xbf16> to vector<8x128xbf16>
    %190 = arith.extf %189 : vector<8x128xbf16> to vector<8x128xf32>
    %191 = vector.extract_strided_slice %187 {offsets = [0, 0], sizes = [1, 128], strides = [1, 1]} : vector<8x128xf32> to vector<1x128xf32>
    %192 = vector.broadcast %191 : vector<1x128xf32> to vector<8x128xf32>
    %193 = arith.mulf %190, %192 : vector<8x128xf32>
    %194 = vector.extract_strided_slice %1 {offsets = [9, 0, 0], sizes = [1, 8, 128], strides = [1, 1, 1]} : vector<16x8x128xbf16> to vector<1x8x128xbf16>
    %195 = vector.shape_cast %194 : vector<1x8x128xbf16> to vector<8x128xbf16>
    %196 = arith.extf %195 : vector<8x128xbf16> to vector<8x128xf32>
    %197 = vector.extract_strided_slice %187 {offsets = [1, 0], sizes = [1, 128], strides = [1, 1]} : vector<8x128xf32> to vector<1x128xf32>
    %198 = vector.broadcast %197 : vector<1x128xf32> to vector<8x128xf32>
    %199 = arith.mulf %196, %198 : vector<8x128xf32>
    %200 = vector.extract_strided_slice %1 {offsets = [10, 0, 0], sizes = [1, 8, 128], strides = [1, 1, 1]} : vector<16x8x128xbf16> to vector<1x8x128xbf16>
    %201 = vector.shape_cast %200 : vector<1x8x128xbf16> to vector<8x128xbf16>
    %202 = arith.extf %201 : vector<8x128xbf16> to vector<8x128xf32>
    %203 = vector.extract_strided_slice %187 {offsets = [2, 0], sizes = [1, 128], strides = [1, 1]} : vector<8x128xf32> to vector<1x128xf32>
    %204 = vector.broadcast %203 : vector<1x128xf32> to vector<8x128xf32>
    %205 = arith.mulf %202, %204 : vector<8x128xf32>
    %206 = vector.extract_strided_slice %1 {offsets = [11, 0, 0], sizes = [1, 8, 128], strides = [1, 1, 1]} : vector<16x8x128xbf16> to vector<1x8x128xbf16>
    %207 = vector.shape_cast %206 : vector<1x8x128xbf16> to vector<8x128xbf16>
    %208 = arith.extf %207 : vector<8x128xbf16> to vector<8x128xf32>
    %209 = vector.extract_strided_slice %187 {offsets = [3, 0], sizes = [1, 128], strides = [1, 1]} : vector<8x128xf32> to vector<1x128xf32>
    %210 = vector.broadcast %209 : vector<1x128xf32> to vector<8x128xf32>
    %211 = arith.mulf %208, %210 : vector<8x128xf32>
    %212 = vector.extract_strided_slice %1 {offsets = [12, 0, 0], sizes = [1, 8, 128], strides = [1, 1, 1]} : vector<16x8x128xbf16> to vector<1x8x128xbf16>
    %213 = vector.shape_cast %212 : vector<1x8x128xbf16> to vector<8x128xbf16>
    %214 = arith.extf %213 : vector<8x128xbf16> to vector<8x128xf32>
    %215 = vector.extract_strided_slice %187 {offsets = [4, 0], sizes = [1, 128], strides = [1, 1]} : vector<8x128xf32> to vector<1x128xf32>
    %216 = vector.broadcast %215 : vector<1x128xf32> to vector<8x128xf32>
    %217 = arith.mulf %214, %216 : vector<8x128xf32>
    %218 = vector.extract_strided_slice %1 {offsets = [13, 0, 0], sizes = [1, 8, 128], strides = [1, 1, 1]} : vector<16x8x128xbf16> to vector<1x8x128xbf16>
    %219 = vector.shape_cast %218 : vector<1x8x128xbf16> to vector<8x128xbf16>
    %220 = arith.extf %219 : vector<8x128xbf16> to vector<8x128xf32>
    %221 = vector.extract_strided_slice %187 {offsets = [5, 0], sizes = [1, 128], strides = [1, 1]} : vector<8x128xf32> to vector<1x128xf32>
    %222 = vector.broadcast %221 : vector<1x128xf32> to vector<8x128xf32>
    %223 = arith.mulf %220, %222 : vector<8x128xf32>
    %224 = vector.extract_strided_slice %1 {offsets = [14, 0, 0], sizes = [1, 8, 128], strides = [1, 1, 1]} : vector<16x8x128xbf16> to vector<1x8x128xbf16>
    %225 = vector.shape_cast %224 : vector<1x8x128xbf16> to vector<8x128xbf16>
    %226 = arith.extf %225 : vector<8x128xbf16> to vector<8x128xf32>
    %227 = vector.extract_strided_slice %187 {offsets = [6, 0], sizes = [1, 128], strides = [1, 1]} : vector<8x128xf32> to vector<1x128xf32>
    %228 = vector.broadcast %227 : vector<1x128xf32> to vector<8x128xf32>
    %229 = arith.mulf %226, %228 : vector<8x128xf32>
    %230 = vector.extract_strided_slice %1 {offsets = [15, 0, 0], sizes = [1, 8, 128], strides = [1, 1, 1]} : vector<16x8x128xbf16> to vector<1x8x128xbf16>
    %231 = vector.shape_cast %230 : vector<1x8x128xbf16> to vector<8x128xbf16>
    %232 = arith.extf %231 : vector<8x128xbf16> to vector<8x128xf32>
    %233 = vector.extract_strided_slice %187 {offsets = [7, 0], sizes = [1, 128], strides = [1, 1]} : vector<8x128xf32> to vector<1x128xf32>
    %234 = vector.broadcast %233 : vector<1x128xf32> to vector<8x128xf32>
    %235 = arith.mulf %232, %234 : vector<8x128xf32>
    %236 = arith.addf %193, %199 : vector<8x128xf32>
    %237 = arith.addf %205, %211 : vector<8x128xf32>
    %238 = arith.addf %217, %223 : vector<8x128xf32>
    %239 = arith.addf %229, %235 : vector<8x128xf32>
    %240 = arith.addf %236, %237 : vector<8x128xf32>
    %241 = arith.addf %238, %239 : vector<8x128xf32>
    %242 = arith.addf %240, %241 : vector<8x128xf32>
    %243 = tpu.concatenate %186, %242 in 0 : vector<8x128xf32>, vector<8x128xf32> -> vector<16x128xf32>
    %244 = arith.truncf %243 : vector<16x128xf32> to vector<16x128xbf16>
    %c1_19 = arith.constant 1 : index
    %c0_20 = arith.constant 0 : index
    %c0_21 = arith.constant 0 : index
    %245 = vector.load %arg4[%c1_19, %c0_20, %c0_21] : memref<2x128x32xbf16, #tpu.memory_space<vmem>>, vector<1x128x32xbf16>
    %246 = vector.shape_cast %245 : vector<1x128x32xbf16> to vector<128x32xbf16>
    %cst_22 = arith.constant dense<0.000000e+00> : vector<16x32xf32>
    %247 = tpu.matmul %244, %246, %cst_22 {dimension_numbers = #tpu.dot_dimension_numbers<[1], [0], [0], [1], [0, 0, 1, 1], [], []>} : vector<16x128xbf16>, vector<128x32xbf16>, vector<16x32xf32> -> vector<16x32xf32>
    %c1_23 = arith.constant 1 : index
    %c0_24 = arith.constant 0 : index
    %c0_25 = arith.constant 0 : index
    %248 = vector.load %arg5[%c1_23, %c0_24, %c0_25] : memref<2x16x32xf32, #tpu.memory_space<vmem>>, vector<1x16x32xf32>
    %249 = vector.shape_cast %248 : vector<1x16x32xf32> to vector<16x32xf32>
    %250 = arith.mulf %247, %249 : vector<16x32xf32>
    %c0_26 = arith.constant 0 : index
    %c0_27 = arith.constant 0 : index
    %251 = vector.load %arg6[%c0_26, %c0_27] : memref<16x32xf32, #tpu.memory_space<vmem>>, vector<16x32xf32>
    %252 = arith.mulf %126, %251 : vector<16x32xf32>
    %cst_28 = arith.constant dense<0.000000e+00> : vector<16xf32>
    %253 = vector.multi_reduction <add>, %252, %cst_28 [1] : vector<16x32xf32> to vector<16xf32>
    %254 = vector.shape_cast %253 : vector<16xf32> to vector<16x1xf32>
    %255 = arith.mulf %250, %251 : vector<16x32xf32>
    %cst_29 = arith.constant dense<0.000000e+00> : vector<16xf32>
    %256 = vector.multi_reduction <add>, %255, %cst_29 [1] : vector<16x32xf32> to vector<16xf32>
    %257 = vector.shape_cast %256 : vector<16xf32> to vector<16x1xf32>
    %258 = arith.maximumf %254, %257 : vector<16x1xf32>
    %259 = arith.subf %254, %258 : vector<16x1xf32>
    %260 = math.exp %259 : vector<16x1xf32>
    %261 = arith.subf %257, %258 : vector<16x1xf32>
    %262 = math.exp %261 : vector<16x1xf32>
    %263 = arith.addf %260, %262 : vector<16x1xf32>
    %264 = tpu.reciprocal %263 {approx = true} : vector<16x1xf32> -> vector<16x1xf32>
    %265 = arith.mulf %260, %264 : vector<16x1xf32>
    %266 = vector.broadcast %265 : vector<16x1xf32> to vector<16x32xf32>
    %267 = arith.mulf %266, %126 : vector<16x32xf32>
    %268 = arith.mulf %262, %264 : vector<16x1xf32>
    %269 = vector.broadcast %268 : vector<16x1xf32> to vector<16x32xf32>
    %270 = arith.mulf %269, %250 : vector<16x32xf32>
    %271 = arith.addf %267, %270 : vector<16x32xf32>
    %c0_30 = arith.constant 0 : index
    %c0_31 = arith.constant 0 : index
    %272 = vector.load %arg7[%c0_30, %c0_31] : memref<16x32xbf16, #tpu.memory_space<vmem>>, vector<16x32xbf16>
    %c0_32 = arith.constant 0 : index
    %c0_33 = arith.constant 0 : index
    %273 = vector.load %arg8[%c0_32, %c0_33] : memref<32x128xbf16, #tpu.memory_space<vmem>>, vector<32x128xbf16>
    %cst_34 = arith.constant dense<0.000000e+00> : vector<16x128xf32>
    %274 = tpu.matmul %272, %273, %cst_34 {dimension_numbers = #tpu.dot_dimension_numbers<[1], [0], [0], [1], [0, 0, 1, 1], [], []>} : vector<16x32xbf16>, vector<32x128xbf16>, vector<16x128xf32> -> vector<16x128xf32>
    %275 = arith.truncf %271 : vector<16x32xf32> to vector<16x32xbf16>
    %c0_35 = arith.constant 0 : index
    %c0_36 = arith.constant 0 : index
    %276 = vector.load %arg9[%c0_35, %c0_36] : memref<32x128xbf16, #tpu.memory_space<vmem>>, vector<32x128xbf16>
    %cst_37 = arith.constant dense<0.000000e+00> : vector<16x128xf32>
    %277 = tpu.matmul %275, %276, %cst_37 {dimension_numbers = #tpu.dot_dimension_numbers<[1], [0], [0], [1], [0, 0, 1, 1], [], []>} : vector<16x32xbf16>, vector<32x128xbf16>, vector<16x128xf32> -> vector<16x128xf32>
    %278 = arith.addf %274, %277 : vector<16x128xf32>
    %c0_38 = arith.constant 0 : index
    %c0_39 = arith.constant 0 : index
    %279 = vector.load %arg10[%c0_38, %c0_39] : memref<1x128xf32, #tpu.memory_space<vmem>>, vector<1x128xf32>
    %280 = vector.broadcast %279 : vector<1x128xf32> to vector<16x128xf32>
    %281 = arith.addf %278, %280 : vector<16x128xf32>
    %cst_40 = arith.constant 5.000000e-01 : f32
    %282 = vector.broadcast %cst_40 : f32 to vector<16x128xf32>
    %283 = arith.mulf %282, %281 : vector<16x128xf32>
    %cst_41 = arith.constant 0.707106769 : f32
    %284 = vector.broadcast %cst_41 : f32 to vector<16x128xf32>
    %285 = arith.mulf %281, %284 : vector<16x128xf32>
    %286 = math.erf %285 : vector<16x128xf32>
    %cst_42 = arith.constant 1.000000e+00 : f32
    %287 = vector.broadcast %cst_42 : f32 to vector<16x128xf32>
    %288 = arith.addf %287, %286 : vector<16x128xf32>
    %289 = arith.mulf %283, %288 : vector<16x128xf32>
    %c0_43 = arith.constant 0 : index
    %c0_44 = arith.constant 0 : index
    %290 = vector.load %arg11[%c0_43, %c0_44] : memref<16x128xf32, #tpu.memory_space<vmem>>, vector<16x128xf32>
    tpu.vector_store %arg11[%c0_43, %c0_44], %289 {strides = array<i32>} : memref<16x128xf32, #tpu.memory_space<vmem>>, vector<16x128xf32>,
    return
  }
}

</mosaic_0001>

<llo_original>
// kernel: tpu_custom_call.1
$region0: #{tpu_custom_call.1}
  #allocation0 [shape = 'u32[]', space=smem, size = 0x4, offset = 0x4, fixed_abs, tag = 'smem constant byte address 0x4 - core index']
  #allocation1 [shape = 'u32[144,128]{1,0:T(1,128)}', space=vmem, size = 0x12000, scoped, tag = 'internal scratch']
  %s0 = inlined_call_operand.hbm [shape: bf16[16,128], index: 0, kind: input, shape index: {}]
  %s1 = inlined_call_operand.hbm [shape: f32[16,128], index: 1, kind: input, shape index: {}]
  %s2 = inlined_call_operand.hbm [shape: bf16[16,8,128], index: 2, kind: input, shape index: {}]
  %s3 = inlined_call_operand.vmem [shape: bf16[2,128,128], index: 3, kind: input, shape index: {}]
  %s4 = inlined_call_operand.vmem [shape: bf16[2,128,32], index: 4, kind: input, shape index: {}]
  %s5 = inlined_call_operand.vmem [shape: f32[2,16,32], index: 5, kind: input, shape index: {}]
  %s6 = inlined_call_operand.vmem [shape: f32[16,32], index: 6, kind: input, shape index: {}]
  %s7 = inlined_call_operand.hbm [shape: bf16[16,32], index: 7, kind: input, shape index: {}]
  %s8 = inlined_call_operand.hbm [shape: bf16[32,128], index: 8, kind: input, shape index: {}]
  %s9 = inlined_call_operand.vmem [shape: bf16[32,128], index: 9, kind: input, shape index: {}]
  %s10 = inlined_call_operand.vmem [shape: f32[1,128], index: 10, kind: input, shape index: {}]
  %s11 = inlined_call_operand.hbm [shape: f32[16,128], index: 11, kind: output, shape index: {}]
  %s12 = sld [smem:[#allocation0]]
  $region74: #{tpu_custom_call.1} parent=0
    _
  %s14 = ssub.s32 1, %s12
  %s15 = scalar_select 0, %s14, %s12
  $region1: #{tpu_custom_call.1} parent=0
    #allocation2 [shape = 'u8[4096]{0}', space=vmem, size = 0x1000, scoped, tag = 'input window, operand 0, single buffered']
    #allocation3 [shape = 's32[1]{0}', space=sflag, size = 0x4, scoped, tag = 'scoped memory for tpu_custom_call.1']
    #allocation4 [shape = 's32[1]{0}', space=sflag, size = 0x4, scoped, tag = 'scoped memory for tpu_custom_call.1']
    #allocation5 [shape = 'u8[8192]{0}', space=vmem, size = 0x2000, scoped, tag = 'input window, operand 1, single buffered']
    #allocation6 [shape = 's32[1]{0}', space=sflag, size = 0x4, scoped, tag = 'scoped memory for tpu_custom_call.1']
    #allocation7 [shape = 'u8[32768]{0}', space=vmem, size = 0x8000, scoped, tag = 'input window, operand 2, single buffered']
    #allocation8 [shape = 'u8[4096]{0}', space=vmem, size = 0x1000, scoped, tag = 'input window, operand 7, single buffered']
    #allocation9 [shape = 's32[1]{0}', space=sflag, size = 0x4, scoped, tag = 'scoped memory for tpu_custom_call.1']
    #allocation10 [shape = 'u8[8192]{0}', space=vmem, size = 0x2000, scoped, tag = 'input window, operand 8, single buffered']
    #allocation11 [shape = 'u8[8192]{0}', space=vmem, size = 0x2000, scoped, tag = 'output window, operand 0, single buffered']
    %16 = vsyncpa [#allocation3], 0
    %17 = vsyncpa [#allocation6], 0
    %18 = vsyncpa [#allocation9], 0
    %19 = vsyncpa [#allocation4], 0
    // Predicated region
    $region2: #{tpu_custom_call.1} parent=1 // pred_check
      _
    $region3: #{tpu_custom_call.1} parent=1 // pred_check_branch
      %21 = sbr.rel (0) target = $region5
    $region4: #{tpu_custom_call.1} parent=1 // pred_region
      %s23 = ssub.s32 128, 128
      %24 = vsyncadd [#allocation3], %s23
      %s25 = sshll.u32 [#allocation2], 4
      %s26 = int_to_ptr.vmem [resolvable:$true] %s25
      %31 = dma.hbm_to_vmem [thread:$0]  %s0, 128, %s26, [#allocation3], 64, 64, 4
    $region5: #{tpu_custom_call.1} parent=1 // pred_fallthru
      _
    // Predicated region
    $region6: #{tpu_custom_call.1} parent=1 // pred_check
      _
    $region7: #{tpu_custom_call.1} parent=1 // pred_check_branch
      %33 = sbr.rel (0) target = $region9
    $region8: #{tpu_custom_call.1} parent=1 // pred_region
      %s35 = ssub.s32 256, 256
      %36 = vsyncadd [#allocation6], %s35
      %s37 = sshll.u32 [#allocation5], 4
      %s38 = int_to_ptr.vmem [resolvable:$true] %s37
      %43 = dma.hbm_to_vmem [thread:$0]  %s1, 256, %s38, [#allocation6], 128, 128, 8
    $region9: #{tpu_custom_call.1} parent=1 // pred_fallthru
      _
    // Predicated region
    $region10: #{tpu_custom_call.1} parent=1 // pred_check
      _
    $region11: #{tpu_custom_call.1} parent=1 // pred_check_branch
      %45 = sbr.rel (0) target = $region13
    $region12: #{tpu_custom_call.1} parent=1 // pred_region
      %s47 = ssub.s32 1024, 1024
      %48 = vsyncadd [#allocation6], %s47
      %s49 = sshll.u32 [#allocation7], 4
      %s50 = int_to_ptr.vmem [resolvable:$true] %s49
      %55 = dma.hbm_to_vmem [thread:$0]  %s2, 1024, %s50, [#allocation6], 64, 64, 4
    $region13: #{tpu_custom_call.1} parent=1 // pred_fallthru
      _
    // Predicated region
    $region14: #{tpu_custom_call.1} parent=1 // pred_check
      _
    $region15: #{tpu_custom_call.1} parent=1 // pred_check_branch
      %57 = sbr.rel (0) target = $region17
    $region16: #{tpu_custom_call.1} parent=1 // pred_region
      _
    $region17: #{tpu_custom_call.1} parent=1 // pred_fallthru
      _
    // Predicated region
    $region18: #{tpu_custom_call.1} parent=1 // pred_check
      _
    $region19: #{tpu_custom_call.1} parent=1 // pred_check_branch
      %59 = sbr.rel (0) target = $region21
    $region20: #{tpu_custom_call.1} parent=1 // pred_region
      _
    $region21: #{tpu_custom_call.1} parent=1 // pred_fallthru
      _
    // Predicated region
    $region22: #{tpu_custom_call.1} parent=1 // pred_check
      _
    $region23: #{tpu_custom_call.1} parent=1 // pred_check_branch
      %61 = sbr.rel (0) target = $region25
    $region24: #{tpu_custom_call.1} parent=1 // pred_region
      _
    $region25: #{tpu_custom_call.1} parent=1 // pred_fallthru
      _
    // Predicated region
    $region26: #{tpu_custom_call.1} parent=1 // pred_check
      _
    $region27: #{tpu_custom_call.1} parent=1 // pred_check_branch
      %63 = sbr.rel (0) target = $region29
    $region28: #{tpu_custom_call.1} parent=1 // pred_region
      _
    $region29: #{tpu_custom_call.1} parent=1 // pred_fallthru
      _
    // Predicated region
    $region30: #{tpu_custom_call.1} parent=1 // pred_check
      _
    $region31: #{tpu_custom_call.1} parent=1 // pred_check_branch
      %65 = sbr.rel (0) target = $region33
    $region32: #{tpu_custom_call.1} parent=1 // pred_region
      %s67 = ssub.s32 128, 128
      %68 = vsyncadd [#allocation9], %s67
      %s69 = sshll.u32 [#allocation8], 4
      %s70 = int_to_ptr.vmem [resolvable:$true] %s69
      %75 = dma.hbm_to_vmem [thread:$0]  %s7, 128, %s70, [#allocation9], 64, 64, 4
    $region33: #{tpu_custom_call.1} parent=1 // pred_fallthru
      _
    // Predicated region
    $region34: #{tpu_custom_call.1} parent=1 // pred_check
      _
    $region35: #{tpu_custom_call.1} parent=1 // pred_check_branch
      %77 = sbr.rel (0) target = $region37
    $region36: #{tpu_custom_call.1} parent=1 // pred_region
      %s79 = ssub.s32 256, 256
      %80 = vsyncadd [#allocation9], %s79
      %s81 = sshll.u32 [#allocation10], 4
      %s82 = int_to_ptr.vmem [resolvable:$true] %s81
      %87 = dma.hbm_to_vmem [thread:$0]  %s8, 256, %s82, [#allocation9], 64, 64, 4
    $region37: #{tpu_custom_call.1} parent=1 // pred_fallthru
      _
    // Predicated region
    $region38: #{tpu_custom_call.1} parent=1 // pred_check
      _
    $region39: #{tpu_custom_call.1} parent=1 // pred_check_branch
      %89 = sbr.rel (0) target = $region41
    $region40: #{tpu_custom_call.1} parent=1 // pred_region
      _
    $region41: #{tpu_custom_call.1} parent=1 // pred_fallthru
      _
    // Predicated region
    $region42: #{tpu_custom_call.1} parent=1 // pred_check
      _
    $region43: #{tpu_custom_call.1} parent=1 // pred_check_branch
      %91 = sbr.rel (0) target = $region45
    $region44: #{tpu_custom_call.1} parent=1 // pred_region
      _
    $region45: #{tpu_custom_call.1} parent=1 // pred_fallthru
      _
    // Predicated region
    $region46: #{tpu_custom_call.1} parent=1 // pred_check
      _
    $region47: #{tpu_custom_call.1} parent=1 // pred_check_branch
      %93 = sbr.rel (0) target = $region49
    $region48: #{tpu_custom_call.1} parent=1 // pred_region
      %94 = dma.done [#allocation3], 128
    $region49: #{tpu_custom_call.1} parent=1 // pred_fallthru
      _
    // Predicated region
    $region50: #{tpu_custom_call.1} parent=1 // pred_check
      _
    $region51: #{tpu_custom_call.1} parent=1 // pred_check_branch
      %96 = sbr.rel (0) target = $region53
    $region52: #{tpu_custom_call.1} parent=1 // pred_region
      %97 = dma.done [#allocation6], 256
    $region53: #{tpu_custom_call.1} parent=1 // pred_fallthru
      _
    // Predicated region
    $region54: #{tpu_custom_call.1} parent=1 // pred_check
      _
    $region55: #{tpu_custom_call.1} parent=1 // pred_check_branch
      %99 = sbr.rel (0) target = $region57
    $region56: #{tpu_custom_call.1} parent=1 // pred_region
      %100 = dma.done [#allocation6], 1024
    $region57: #{tpu_custom_call.1} parent=1 // pred_fallthru
      _
    // Predicated region
    $region58: #{tpu_custom_call.1} parent=1 // pred_check
      _
    $region59: #{tpu_custom_call.1} parent=1 // pred_check_branch
      %102 = sbr.rel (0) target = $region61
    $region60: #{tpu_custom_call.1} parent=1 // pred_region
      %103 = dma.done [#allocation9], 128
    $region61: #{tpu_custom_call.1} parent=1 // pred_fallthru
      _
    // Predicated region
    $region62: #{tpu_custom_call.1} parent=1 // pred_check
      _
    $region63: #{tpu_custom_call.1} parent=1 // pred_check_branch
      %105 = sbr.rel (0) target = $region65
    $region64: #{tpu_custom_call.1} parent=1 // pred_region
      %106 = dma.done [#allocation9], 256
    $region65: #{tpu_custom_call.1} parent=1 // pred_fallthru
      _
    %v108 = vld [vmem:[#allocation5] sm:$0xff]
    %v109 = vld [vmem:[#allocation5 + $0x8] sm:$0xff]
    %v110 = vld [vmem:[#allocation7] sm:$0xf]
    %v111 = vld [vmem:[#allocation7 + $0x4] sm:$0xf]
    %v112 = vld [vmem:[#allocation7 + $0x8] sm:$0xf]
    %v113 = vld [vmem:[#allocation7 + $0xc] sm:$0xf]
    %v114 = vld [vmem:[#allocation7 + $0x10] sm:$0xf]
    %v115 = vld [vmem:[#allocation7 + $0x14] sm:$0xf]
    %v116 = vld [vmem:[#allocation7 + $0x18] sm:$0xf]
    %v117 = vld [vmem:[#allocation7 + $0x1c] sm:$0xf]
    %v118 = vld [vmem:[#allocation7 + $0x20] sm:$0xf]
    %v119 = vld [vmem:[#allocation7 + $0x24] sm:$0xf]
    %v120 = vld [vmem:[#allocation7 + $0x28] sm:$0xf]
    %v121 = vld [vmem:[#allocation7 + $0x2c] sm:$0xf]
    %v122 = vld [vmem:[#allocation7 + $0x30] sm:$0xf]
    %v123 = vld [vmem:[#allocation7 + $0x34] sm:$0xf]
    %v124 = vld [vmem:[#allocation7 + $0x38] sm:$0xf]
    %v125 = vld [vmem:[#allocation7 + $0x3c] sm:$0xf]
    %v126 = vld [vmem:[#allocation2] sm:$0xf]
    %v127 = vld [vmem:[#allocation2 + $0x4] sm:$0xf]
    %v128 = vld [vmem:[%s3] sm:$0xf]
    %v129 = vld [vmem:[%s3 + $0x4] sm:$0xf]
    %v130 = vld [vmem:[%s3 + $0x8] sm:$0xf]
    %v131 = vld [vmem:[%s3 + $0xc] sm:$0xf]
    %v132 = vld [vmem:[%s3 + $0x10] sm:$0xf]
    %v133 = vld [vmem:[%s3 + $0x14] sm:$0xf]
    %v134 = vld [vmem:[%s3 + $0x18] sm:$0xf]
    %v135 = vld [vmem:[%s3 + $0x1c] sm:$0xf]
    %v136 = vld [vmem:[%s3 + $0x20] sm:$0xf]
    %v137 = vld [vmem:[%s3 + $0x24] sm:$0xf]
    %v138 = vld [vmem:[%s3 + $0x28] sm:$0xf]
    %v139 = vld [vmem:[%s3 + $0x2c] sm:$0xf]
    %v140 = vld [vmem:[%s3 + $0x30] sm:$0xf]
    %v141 = vld [vmem:[%s3 + $0x34] sm:$0xf]
    %v142 = vld [vmem:[%s3 + $0x38] sm:$0xf]
    %v143 = vld [vmem:[%s3 + $0x3c] sm:$0xf]
    %v146 = vunpack.c.l.b16 %v126
    %v147 = vunpack.c.l.b16 %v127
    %v148 = vpack.c.b16 %v147, %v146
    %v166 = vunpack.c.l.b16 %v128
    %v167 = vunpack.c.l.b16 %v129
    %v168 = vunpack.c.l.b16 %v130
    %v169 = vunpack.c.l.b16 %v131
    %v170 = vunpack.c.l.b16 %v132
    %v171 = vunpack.c.l.b16 %v133
    %v172 = vunpack.c.l.b16 %v134
    %v173 = vunpack.c.l.b16 %v135
    %v174 = vunpack.c.l.b16 %v136
    %v175 = vunpack.c.l.b16 %v137
    %v176 = vunpack.c.l.b16 %v138
    %v177 = vunpack.c.l.b16 %v139
    %v178 = vunpack.c.l.b16 %v140
    %v179 = vunpack.c.l.b16 %v141
    %v180 = vunpack.c.l.b16 %v142
    %v181 = vunpack.c.l.b16 %v143
    %v182 = vpack.c.b16 %v167, %v166
    %v183 = vpack.c.b16 %v169, %v168
    %v184 = vpack.c.b16 %v171, %v170
    %v185 = vpack.c.b16 %v173, %v172
    %v186 = vpack.c.b16 %v175, %v174
    %v187 = vpack.c.b16 %v177, %v176
    %v188 = vpack.c.b16 %v179, %v178
    %v189 = vpack.c.b16 %v181, %v180
    %198 = vmatprep.subr.bf16.mxu0 0
    %199 = vmatpush1.bf16.msra.mxu0 %v182
    %200 = vmatprep.subr.bf16.mxu0 0
    %201 = vmatpush1.bf16.msra.mxu0 %v183
    %202 = vmatprep.subr.bf16.mxu0 0
    %203 = vmatpush1.bf16.msra.mxu0 %v184
    %204 = vmatprep.subr.bf16.mxu0 0
    %205 = vmatpush1.bf16.msra.mxu0 %v185
    %206 = vmatprep.subr.bf16.mxu0 0
    %207 = vmatpush1.bf16.msra.mxu0 %v186
    %208 = vmatprep.subr.bf16.mxu0 0
    %209 = vmatpush1.bf16.msra.mxu0 %v187
    %210 = vmatprep.subr.bf16.mxu0 0
    %211 = vmatpush1.bf16.msra.mxu0 %v188
    %212 = vmatprep.subr.bf16.mxu0 0
    %213 = vmatpush1.bf16.msra.mxu0 %v189
    %214 = vmatprep.subr.bf16.mxu0 0
    %215 = vmatpush1.bf16.msra.mxu0 0
    %216 = vmatprep.subr.bf16.mxu0 0
    %217 = vmatpush1.bf16.msra.mxu0 0
    %218 = vmatprep.subr.bf16.mxu0 0
    %219 = vmatpush1.bf16.msra.mxu0 0
    %220 = vmatprep.subr.bf16.mxu0 0
    %221 = vmatpush1.bf16.msra.mxu0 0
    %222 = vmatprep.subr.bf16.mxu0 0
    %223 = vmatpush1.bf16.msra.mxu0 0
    %224 = vmatprep.subr.bf16.mxu0 0
    %225 = vmatpush1.bf16.msra.mxu0 0
    %226 = vmatprep.subr.bf16.mxu0 0
    %227 = vmatpush1.bf16.msra.mxu0 0
    %228 = vmatprep.subr.bf16.mxu0 0
    %229 = vmatpush1.bf16.msra.mxu0 0
    %230 = vmatprep.mubr.bf16.mxu0 0
    %231 = vmatmul.mubr.bf16.gmra.mrb[0].mxu0 %v148
    %v232 = vpop.f32.mrb[0].mxu0
    %v233 = vadd.f32 0.0, %v232
    %v234 = vpop.f32.mrb[0].mxu0
    %v235 = vpop.f32.mrb[0].mxu0
    %v236 = vadd.f32 0.0, %v235
    %v237 = vpop.f32.mrb[0].mxu0
    %238 = vdwg.mxu0
    %v239 = vmul.f32 %v233, %v108
    %v240 = vmul.f32 %v236, %v109
    %v241 = vunpack.c.l.bf16 %v110
    %v242 = vlaneseq
    %v243 = vshrl.u32 %v242, 7
    %v244 = vsub.s32 0, %v243
    %v245 = vrot.slane %v239, %v244
    %v246 = vmul.f32 %v241, %v245
    %v247 = vunpack.c.l.bf16 %v111
    %v248 = vlaneseq
    %v249 = vshrl.u32 %v248, 7
    %v250 = vsub.s32 1, %v249
    %v251 = vrot.slane %v239, %v250
    %v252 = vmul.f32 %v247, %v251
    %v253 = vunpack.c.l.bf16 %v112
    %v254 = vlaneseq
    %v255 = vshrl.u32 %v254, 7
    %v256 = vsub.s32 2, %v255
    %v257 = vrot.slane %v239, %v256
    %v258 = vmul.f32 %v253, %v257
    %v259 = vunpack.c.l.bf16 %v113
    %v260 = vlaneseq
    %v261 = vshrl.u32 %v260, 7
    %v262 = vsub.s32 3, %v261
    %v263 = vrot.slane %v239, %v262
    %v264 = vmul.f32 %v259, %v263
    %v265 = vunpack.c.l.bf16 %v114
    %v266 = vlaneseq
    %v267 = vshrl.u32 %v266, 7
    %v268 = vsub.s32 4, %v267
    %v269 = vrot.slane %v239, %v268
    %v270 = vmul.f32 %v265, %v269
    %v271 = vunpack.c.l.bf16 %v115
    %v272 = vlaneseq
    %v273 = vshrl.u32 %v272, 7
    %v274 = vsub.s32 5, %v273
    %v275 = vrot.slane %v239, %v274
    %v276 = vmul.f32 %v271, %v275
    %v277 = vunpack.c.l.bf16 %v116
    %v278 = vlaneseq
    %v279 = vshrl.u32 %v278, 7
    %v280 = vsub.s32 6, %v279
    %v281 = vrot.slane %v239, %v280
    %v282 = vmul.f32 %v277, %v281
    %v283 = vunpack.c.l.bf16 %v117
    %v284 = vlaneseq
    %v285 = vshrl.u32 %v284, 7
    %v286 = vsub.s32 7, %v285
    %v287 = vrot.slane %v239, %v286
    %v288 = vmul.f32 %v283, %v287
    %v289 = vadd.f32 %v246, %v252
    %v290 = vadd.f32 %v258, %v264
    %v291 = vadd.f32 %v270, %v276
    %v292 = vadd.f32 %v282, %v288
    %v293 = vadd.f32 %v289, %v290
    %v294 = vadd.f32 %v291, %v292
    %v295 = vadd.f32 %v293, %v294
    %v296 = vunpack.c.l.bf16 %v118
    %v297 = vlaneseq
    %v298 = vshrl.u32 %v297, 7
    %v299 = vsub.s32 0, %v298
    %v300 = vrot.slane %v240, %v299
    %v301 = vmul.f32 %v296, %v300
    %v302 = vunpack.c.l.bf16 %v119
    %v303 = vlaneseq
    %v304 = vshrl.u32 %v303, 7
    %v305 = vsub.s32 1, %v304
    %v306 = vrot.slane %v240, %v305
    %v307 = vmul.f32 %v302, %v306
    %v308 = vunpack.c.l.bf16 %v120
    %v309 = vlaneseq
    %v310 = vshrl.u32 %v309, 7
    %v311 = vsub.s32 2, %v310
    %v312 = vrot.slane %v240, %v311
    %v313 = vmul.f32 %v308, %v312
    %v314 = vunpack.c.l.bf16 %v121
    %v315 = vlaneseq
    %v316 = vshrl.u32 %v315, 7
    %v317 = vsub.s32 3, %v316
    %v318 = vrot.slane %v240, %v317
    %v319 = vmul.f32 %v314, %v318
    %v320 = vunpack.c.l.bf16 %v122
    %v321 = vlaneseq
    %v322 = vshrl.u32 %v321, 7
    %v323 = vsub.s32 4, %v322
    %v324 = vrot.slane %v240, %v323
    %v325 = vmul.f32 %v320, %v324
    %v326 = vunpack.c.l.bf16 %v123
    %v327 = vlaneseq
    %v328 = vshrl.u32 %v327, 7
    %v329 = vsub.s32 5, %v328
    %v330 = vrot.slane %v240, %v329
    %v331 = vmul.f32 %v326, %v330
    %v332 = vunpack.c.l.bf16 %v124
    %v333 = vlaneseq
    %v334 = vshrl.u32 %v333, 7
    %v335 = vsub.s32 6, %v334
    %v336 = vrot.slane %v240, %v335
    %v337 = vmul.f32 %v332, %v336
    %v338 = vunpack.c.l.bf16 %v125
    %v339 = vlaneseq
    %v340 = vshrl.u32 %v339, 7
    %v341 = vsub.s32 7, %v340
    %v342 = vrot.slane %v240, %v341
    %v343 = vmul.f32 %v338, %v342
    %v344 = vadd.f32 %v301, %v307
    %v345 = vadd.f32 %v313, %v319
    %v346 = vadd.f32 %v325, %v331
    %v347 = vadd.f32 %v337, %v343
    %v348 = vadd.f32 %v344, %v345
    %v349 = vadd.f32 %v346, %v347
    %v350 = vadd.f32 %v348, %v349
    %v351 = vpack.c.bf16 %v350, %v295
    %v352 = vld [vmem:[%s4] sm:$0xf]
    %v353 = vld [vmem:[%s4 + $0x4] sm:$0xf]
    %v354 = vld [vmem:[%s4 + $0x8] sm:$0xf]
    %v355 = vld [vmem:[%s4 + $0xc] sm:$0xf]
    %v356 = vld [vmem:[%s4 + $0x10] sm:$0xf]
    %v357 = vld [vmem:[%s4 + $0x14] sm:$0xf]
    %v358 = vld [vmem:[%s4 + $0x18] sm:$0xf]
    %v359 = vld [vmem:[%s4 + $0x1c] sm:$0xf]
    %v360 = vld [vmem:[%s4 + $0x20] sm:$0xf]
    %v361 = vld [vmem:[%s4 + $0x24] sm:$0xf]
    %v362 = vld [vmem:[%s4 + $0x28] sm:$0xf]
    %v363 = vld [vmem:[%s4 + $0x2c] sm:$0xf]
    %v364 = vld [vmem:[%s4 + $0x30] sm:$0xf]
    %v365 = vld [vmem:[%s4 + $0x34] sm:$0xf]
    %v366 = vld [vmem:[%s4 + $0x38] sm:$0xf]
    %v367 = vld [vmem:[%s4 + $0x3c] sm:$0xf]
    %v384 = vunpack.c.l.b16 %v352
    %v385 = vunpack.c.l.b16 %v353
    %v386 = vunpack.c.l.b16 %v354
    %v387 = vunpack.c.l.b16 %v355
    %v388 = vunpack.c.l.b16 %v356
    %v389 = vunpack.c.l.b16 %v357
    %v390 = vunpack.c.l.b16 %v358
    %v391 = vunpack.c.l.b16 %v359
    %v392 = vunpack.c.l.b16 %v360
    %v393 = vunpack.c.l.b16 %v361
    %v394 = vunpack.c.l.b16 %v362
    %v395 = vunpack.c.l.b16 %v363
    %v396 = vunpack.c.l.b16 %v364
    %v397 = vunpack.c.l.b16 %v365
    %v398 = vunpack.c.l.b16 %v366
    %v399 = vunpack.c.l.b16 %v367
    %v400 = vpack.c.b16 %v385, %v384
    %v401 = vpack.c.b16 %v387, %v386
    %v402 = vpack.c.b16 %v389, %v388
    %v403 = vpack.c.b16 %v391, %v390
    %v404 = vpack.c.b16 %v393, %v392
    %v405 = vpack.c.b16 %v395, %v394
    %v406 = vpack.c.b16 %v397, %v396
    %v407 = vpack.c.b16 %v399, %v398
    %416 = vmatprep.subr.bf16.mxu0 0
    %417 = vmatpush1.bf16.msra.mxu0 %v400
    %418 = vmatprep.subr.bf16.mxu0 0
    %419 = vmatpush1.bf16.msra.mxu0 %v401
    %420 = vmatprep.subr.bf16.mxu0 0
    %421 = vmatpush1.bf16.msra.mxu0 %v402
    %422 = vmatprep.subr.bf16.mxu0 0
    %423 = vmatpush1.bf16.msra.mxu0 %v403
    %424 = vmatprep.subr.bf16.mxu0 0
    %425 = vmatpush1.bf16.msra.mxu0 %v404
    %426 = vmatprep.subr.bf16.mxu0 0
    %427 = vmatpush1.bf16.msra.mxu0 %v405
    %428 = vmatprep.subr.bf16.mxu0 0
    %429 = vmatpush1.bf16.msra.mxu0 %v406
    %430 = vmatprep.subr.bf16.mxu0 0
    %431 = vmatpush1.bf16.msra.mxu0 %v407
    %432 = vmatprep.subr.bf16.mxu0 0
    %433 = vmatpush1.bf16.msra.mxu0 0
    %434 = vmatprep.subr.bf16.mxu0 0
    %435 = vmatpush1.bf16.msra.mxu0 0
    %436 = vmatprep.subr.bf16.mxu0 0
    %437 = vmatpush1.bf16.msra.mxu0 0
    %438 = vmatprep.subr.bf16.mxu0 0
    %439 = vmatpush1.bf16.msra.mxu0 0
    %440 = vmatprep.subr.bf16.mxu0 0
    %441 = vmatpush1.bf16.msra.mxu0 0
    %442 = vmatprep.subr.bf16.mxu0 0
    %443 = vmatpush1.bf16.msra.mxu0 0
    %444 = vmatprep.subr.bf16.mxu0 0
    %445 = vmatpush1.bf16.msra.mxu0 0
    %446 = vmatprep.subr.bf16.mxu0 0
    %447 = vmatpush1.bf16.msra.mxu0 0
    %448 = vmatprep.mubr.bf16.mxu0 0
    %449 = vmatmul.mubr.bf16.gmra.mrb[0].mxu0 %v351
    %v450 = vpop.f32.mrb[0].mxu0
    %v451 = vadd.f32 0.0, %v450
    %v452 = vpop.f32.mrb[0].mxu0
    %v453 = vpop.f32.mrb[0].mxu0
    %v454 = vadd.f32 0.0, %v453
    %v455 = vpop.f32.mrb[0].mxu0
    %456 = vdwg.mxu0
    %v457 = vld [vmem:[%s5] sm:$0xff]
    %v458 = vld [vmem:[%s5 + $0x8] sm:$0xff]
    %v459 = vmul.f32 %v451, %v457
    %v460 = vmul.f32 %v454, %v458
    %s461 = scalar_lea.vmem %s3, 64
    %v462 = vld [vmem:[%s461] sm:$0xf]
    %v463 = vld [vmem:[%s461 + $0x4] sm:$0xf]
    %v464 = vld [vmem:[%s461 + $0x8] sm:$0xf]
    %v465 = vld [vmem:[%s461 + $0xc] sm:$0xf]
    %v466 = vld [vmem:[%s461 + $0x10] sm:$0xf]
    %v467 = vld [vmem:[%s461 + $0x14] sm:$0xf]
    %v468 = vld [vmem:[%s461 + $0x18] sm:$0xf]
    %v469 = vld [vmem:[%s461 + $0x1c] sm:$0xf]
    %v470 = vld [vmem:[%s461 + $0x20] sm:$0xf]
    %v471 = vld [vmem:[%s461 + $0x24] sm:$0xf]
    %v472 = vld [vmem:[%s461 + $0x28] sm:$0xf]
    %v473 = vld [vmem:[%s461 + $0x2c] sm:$0xf]
    %v474 = vld [vmem:[%s461 + $0x30] sm:$0xf]
    %v475 = vld [vmem:[%s461 + $0x34] sm:$0xf]
    %v476 = vld [vmem:[%s461 + $0x38] sm:$0xf]
    %v477 = vld [vmem:[%s461 + $0x3c] sm:$0xf]
    %v494 = vunpack.c.l.b16 %v462
    %v495 = vunpack.c.l.b16 %v463
    %v496 = vunpack.c.l.b16 %v464
    %v497 = vunpack.c.l.b16 %v465
    %v498 = vunpack.c.l.b16 %v466
    %v499 = vunpack.c.l.b16 %v467
    %v500 = vunpack.c.l.b16 %v468
    %v501 = vunpack.c.l.b16 %v469
    %v502 = vunpack.c.l.b16 %v470
    %v503 = vunpack.c.l.b16 %v471
    %v504 = vunpack.c.l.b16 %v472
    %v505 = vunpack.c.l.b16 %v473
    %v506 = vunpack.c.l.b16 %v474
    %v507 = vunpack.c.l.b16 %v475
    %v508 = vunpack.c.l.b16 %v476
    %v509 = vunpack.c.l.b16 %v477
    %v510 = vpack.c.b16 %v495, %v494
    %v511 = vpack.c.b16 %v497, %v496
    %v512 = vpack.c.b16 %v499, %v498
    %v513 = vpack.c.b16 %v501, %v500
    %v514 = vpack.c.b16 %v503, %v502
    %v515 = vpack.c.b16 %v505, %v504
    %v516 = vpack.c.b16 %v507, %v506
    %v517 = vpack.c.b16 %v509, %v508
    %526 = vmatprep.subr.bf16.mxu0 0
    %527 = vmatpush1.bf16.msra.mxu0 %v510
    %528 = vmatprep.subr.bf16.mxu0 0
    %529 = vmatpush1.bf16.msra.mxu0 %v511
    %530 = vmatprep.subr.bf16.mxu0 0
    %531 = vmatpush1.bf16.msra.mxu0 %v512
    %532 = vmatprep.subr.bf16.mxu0 0
    %533 = vmatpush1.bf16.msra.mxu0 %v513
    %534 = vmatprep.subr.bf16.mxu0 0
    %535 = vmatpush1.bf16.msra.mxu0 %v514
    %536 = vmatprep.subr.bf16.mxu0 0
    %537 = vmatpush1.bf16.msra.mxu0 %v515
    %538 = vmatprep.subr.bf16.mxu0 0
    %539 = vmatpush1.bf16.msra.mxu0 %v516
    %540 = vmatprep.subr.bf16.mxu0 0
    %541 = vmatpush1.bf16.msra.mxu0 %v517
    %542 = vmatprep.subr.bf16.mxu0 0
    %543 = vmatpush1.bf16.msra.mxu0 0
    %544 = vmatprep.subr.bf16.mxu0 0
    %545 = vmatpush1.bf16.msra.mxu0 0
    %546 = vmatprep.subr.bf16.mxu0 0
    %547 = vmatpush1.bf16.msra.mxu0 0
    %548 = vmatprep.subr.bf16.mxu0 0
    %549 = vmatpush1.bf16.msra.mxu0 0
    %550 = vmatprep.subr.bf16.mxu0 0
    %551 = vmatpush1.bf16.msra.mxu0 0
    %552 = vmatprep.subr.bf16.mxu0 0
    %553 = vmatpush1.bf16.msra.mxu0 0
    %554 = vmatprep.subr.bf16.mxu0 0
    %555 = vmatpush1.bf16.msra.mxu0 0
    %556 = vmatprep.subr.bf16.mxu0 0
    %557 = vmatpush1.bf16.msra.mxu0 0
    %558 = vmatprep.mubr.bf16.mxu0 0
    %559 = vmatmul.mubr.bf16.gmra.mrb[0].mxu0 %v351
    %v560 = vpop.f32.mrb[0].mxu0
    %v561 = vadd.f32 0.0, %v560
    %v562 = vpop.f32.mrb[0].mxu0
    %v563 = vpop.f32.mrb[0].mxu0
    %v564 = vadd.f32 0.0, %v563
    %v565 = vpop.f32.mrb[0].mxu0
    %566 = vdwg.mxu0
    %v567 = vmul.f32 %v561, %v108
    %v568 = vmul.f32 %v564, %v109
    %v569 = vlaneseq
    %v570 = vshrl.u32 %v569, 7
    %v571 = vsub.s32 0, %v570
    %v572 = vrot.slane %v567, %v571
    %v573 = vmul.f32 %v241, %v572
    %v574 = vlaneseq
    %v575 = vshrl.u32 %v574, 7
    %v576 = vsub.s32 1, %v575
    %v577 = vrot.slane %v567, %v576
    %v578 = vmul.f32 %v247, %v577
    %v579 = vlaneseq
    %v580 = vshrl.u32 %v579, 7
    %v581 = vsub.s32 2, %v580
    %v582 = vrot.slane %v567, %v581
    %v583 = vmul.f32 %v253, %v582
    %v584 = vlaneseq
    %v585 = vshrl.u32 %v584, 7
    %v586 = vsub.s32 3, %v585
    %v587 = vrot.slane %v567, %v586
    %v588 = vmul.f32 %v259, %v587
    %v589 = vlaneseq
    %v590 = vshrl.u32 %v589, 7
    %v591 = vsub.s32 4, %v590
    %v592 = vrot.slane %v567, %v591
    %v593 = vmul.f32 %v265, %v592
    %v594 = vlaneseq
    %v595 = vshrl.u32 %v594, 7
    %v596 = vsub.s32 5, %v595
    %v597 = vrot.slane %v567, %v596
    %v598 = vmul.f32 %v271, %v597
    %v599 = vlaneseq
    %v600 = vshrl.u32 %v599, 7
    %v601 = vsub.s32 6, %v600
    %v602 = vrot.slane %v567, %v601
    %v603 = vmul.f32 %v277, %v602
    %v604 = vlaneseq
    %v605 = vshrl.u32 %v604, 7
    %v606 = vsub.s32 7, %v605
    %v607 = vrot.slane %v567, %v606
    %v608 = vmul.f32 %v283, %v607
    %v609 = vadd.f32 %v573, %v578
    %v610 = vadd.f32 %v583, %v588
    %v611 = vadd.f32 %v593, %v598
    %v612 = vadd.f32 %v603, %v608
    %v613 = vadd.f32 %v609, %v610
    %v614 = vadd.f32 %v611, %v612
    %v615 = vadd.f32 %v613, %v614
    %v616 = vlaneseq
    %v617 = vshrl.u32 %v616, 7
    %v618 = vsub.s32 0, %v617
    %v619 = vrot.slane %v568, %v618
    %v620 = vmul.f32 %v296, %v619
    %v621 = vlaneseq
    %v622 = vshrl.u32 %v621, 7
    %v623 = vsub.s32 1, %v622
    %v624 = vrot.slane %v568, %v623
    %v625 = vmul.f32 %v302, %v624
    %v626 = vlaneseq
    %v627 = vshrl.u32 %v626, 7
    %v628 = vsub.s32 2, %v627
    %v629 = vrot.slane %v568, %v628
    %v630 = vmul.f32 %v308, %v629
    %v631 = vlaneseq
    %v632 = vshrl.u32 %v631, 7
    %v633 = vsub.s32 3, %v632
    %v634 = vrot.slane %v568, %v633
    %v635 = vmul.f32 %v314, %v634
    %v636 = vlaneseq
    %v637 = vshrl.u32 %v636, 7
    %v638 = vsub.s32 4, %v637
    %v639 = vrot.slane %v568, %v638
    %v640 = vmul.f32 %v320, %v639
    %v641 = vlaneseq
    %v642 = vshrl.u32 %v641, 7
    %v643 = vsub.s32 5, %v642
    %v644 = vrot.slane %v568, %v643
    %v645 = vmul.f32 %v326, %v644
    %v646 = vlaneseq
    %v647 = vshrl.u32 %v646, 7
    %v648 = vsub.s32 6, %v647
    %v649 = vrot.slane %v568, %v648
    %v650 = vmul.f32 %v332, %v649
    %v651 = vlaneseq
    %v652 = vshrl.u32 %v651, 7
    %v653 = vsub.s32 7, %v652
    %v654 = vrot.slane %v568, %v653
    %v655 = vmul.f32 %v338, %v654
    %v656 = vadd.f32 %v620, %v625
    %v657 = vadd.f32 %v630, %v635
    %v658 = vadd.f32 %v640, %v645
    %v659 = vadd.f32 %v650, %v655
    %v660 = vadd.f32 %v656, %v657
    %v661 = vadd.f32 %v658, %v659
    %v662 = vadd.f32 %v660, %v661
    %v663 = vpack.c.bf16 %v662, %v615
    %s664 = scalar_lea.vmem %s4, 64
    %v665 = vld [vmem:[%s664] sm:$0xf]
    %v666 = vld [vmem:[%s664 + $0x4] sm:$0xf]
    %v667 = vld [vmem:[%s664 + $0x8] sm:$0xf]
    %v668 = vld [vmem:[%s664 + $0xc] sm:$0xf]
    %v669 = vld [vmem:[%s664 + $0x10] sm:$0xf]
    %v670 = vld [vmem:[%s664 + $0x14] sm:$0xf]
    %v671 = vld [vmem:[%s664 + $0x18] sm:$0xf]
    %v672 = vld [vmem:[%s664 + $0x1c] sm:$0xf]
    %v673 = vld [vmem:[%s664 + $0x20] sm:$0xf]
    %v674 = vld [vmem:[%s664 + $0x24] sm:$0xf]
    %v675 = vld [vmem:[%s664 + $0x28] sm:$0xf]
    %v676 = vld [vmem:[%s664 + $0x2c] sm:$0xf]
    %v677 = vld [vmem:[%s664 + $0x30] sm:$0xf]
    %v678 = vld [vmem:[%s664 + $0x34] sm:$0xf]
    %v679 = vld [vmem:[%s664 + $0x38] sm:$0xf]
    %v680 = vld [vmem:[%s664 + $0x3c] sm:$0xf]
    %v697 = vunpack.c.l.b16 %v665
    %v698 = vunpack.c.l.b16 %v666
    %v699 = vunpack.c.l.b16 %v667
    %v700 = vunpack.c.l.b16 %v668
    %v701 = vunpack.c.l.b16 %v669
    %v702 = vunpack.c.l.b16 %v670
    %v703 = vunpack.c.l.b16 %v671
    %v704 = vunpack.c.l.b16 %v672
    %v705 = vunpack.c.l.b16 %v673
    %v706 = vunpack.c.l.b16 %v674
    %v707 = vunpack.c.l.b16 %v675
    %v708 = vunpack.c.l.b16 %v676
    %v709 = vunpack.c.l.b16 %v677
    %v710 = vunpack.c.l.b16 %v678
    %v711 = vunpack.c.l.b16 %v679
    %v712 = vunpack.c.l.b16 %v680
    %v713 = vpack.c.b16 %v698, %v697
    %v714 = vpack.c.b16 %v700, %v699
    %v715 = vpack.c.b16 %v702, %v701
    %v716 = vpack.c.b16 %v704, %v703
    %v717 = vpack.c.b16 %v706, %v705
    %v718 = vpack.c.b16 %v708, %v707
    %v719 = vpack.c.b16 %v710, %v709
    %v720 = vpack.c.b16 %v712, %v711
    %729 = vmatprep.subr.bf16.mxu0 0
    %730 = vmatpush1.bf16.msra.mxu0 %v713
    %731 = vmatprep.subr.bf16.mxu0 0
    %732 = vmatpush1.bf16.msra.mxu0 %v714
    %733 = vmatprep.subr.bf16.mxu0 0
    %734 = vmatpush1.bf16.msra.mxu0 %v715
    %735 = vmatprep.subr.bf16.mxu0 0
    %736 = vmatpush1.bf16.msra.mxu0 %v716
    %737 = vmatprep.subr.bf16.mxu0 0
    %738 = vmatpush1.bf16.msra.mxu0 %v717
    %739 = vmatprep.subr.bf16.mxu0 0
    %740 = vmatpush1.bf16.msra.mxu0 %v718
    %741 = vmatprep.subr.bf16.mxu0 0
    %742 = vmatpush1.bf16.msra.mxu0 %v719
    %743 = vmatprep.subr.bf16.mxu0 0
    %744 = vmatpush1.bf16.msra.mxu0 %v720
    %745 = vmatprep.subr.bf16.mxu0 0
    %746 = vmatpush1.bf16.msra.mxu0 0
    %747 = vmatprep.subr.bf16.mxu0 0
    %748 = vmatpush1.bf16.msra.mxu0 0
    %749 = vmatprep.subr.bf16.mxu0 0
    %750 = vmatpush1.bf16.msra.mxu0 0
    %751 = vmatprep.subr.bf16.mxu0 0
    %752 = vmatpush1.bf16.msra.mxu0 0
    %753 = vmatprep.subr.bf16.mxu0 0
    %754 = vmatpush1.bf16.msra.mxu0 0
    %755 = vmatprep.subr.bf16.mxu0 0
    %756 = vmatpush1.bf16.msra.mxu0 0
    %757 = vmatprep.subr.bf16.mxu0 0
    %758 = vmatpush1.bf16.msra.mxu0 0
    %759 = vmatprep.subr.bf16.mxu0 0
    %760 = vmatpush1.bf16.msra.mxu0 0
    %761 = vmatprep.mubr.bf16.mxu0 0
    %762 = vmatmul.mubr.bf16.gmra.mrb[0].mxu0 %v663
    %v763 = vpop.f32.mrb[0].mxu0
    %v764 = vadd.f32 0.0, %v763
    %v765 = vpop.f32.mrb[0].mxu0
    %v766 = vpop.f32.mrb[0].mxu0
    %v767 = vadd.f32 0.0, %v766
    %v768 = vpop.f32.mrb[0].mxu0
    %769 = vdwg.mxu0
    %s770 = scalar_lea.vmem %s5, 16
    %v771 = vld [vmem:[%s770] sm:$0xff]
    %v772 = vld [vmem:[%s770 + $0x8] sm:$0xff]
    %v773 = vmul.f32 %v764, %v771
    %v774 = vmul.f32 %v767, %v772
    %v775 = vld [vmem:[%s6] sm:$0xff]
    %v776 = vld [vmem:[%s6 + $0x8] sm:$0xff]
    %v777 = vmul.f32 %v459, %v775
    %v778 = vmul.f32 %v460, %v776
    %vm779 = vcmask 261120
    %v780 = vsel %vm779, %v777, 0.0
    %781 = vadd.xlane.f32.xlu0 %v780
    %v782 = vpop.xlane.xlu0 %781
    %v783 = vsel %vm779, %v778, 0.0
    %784 = vadd.xlane.f32.xlu0 %v783
    %v785 = vpop.xlane.xlu0 %784
    %v786 = vmul.f32 %v773, %v775
    %v787 = vmul.f32 %v774, %v776
    %v788 = vsel %vm779, %v786, 0.0
    %789 = vadd.xlane.f32.xlu0 %v788
    %v790 = vpop.xlane.xlu0 %789
    %v791 = vsel %vm779, %v787, 0.0
    %792 = vadd.xlane.f32.xlu0 %v791
    %v793 = vpop.xlane.xlu0 %792
    %v794 = vmax.f32 %v782, %v790
    %v795 = vmax.f32 %v785, %v793
    %v796 = vsub.f32 %v782, %v794
    %v797 = vsub.f32 %v785, %v795
    %v798 = vmul.f32 %v796, 1.442695
    %v799 = vpow.pop %v798
    %v800 = vmul.f32 %v797, 1.442695
    %v801 = vpow.pop %v800
    %v802 = vsub.f32 %v790, %v794
    %v803 = vsub.f32 %v793, %v795
    %v804 = vmul.f32 %v802, 1.442695
    %v805 = vpow.pop %v804
    %v806 = vmul.f32 %v803, 1.442695
    %v807 = vpow.pop %v806
    %v808 = vadd.f32 %v799, %v805
    %v809 = vadd.f32 %v801, %v807
    %v810 = vrcp.pop %v808
    %v811 = vrcp.pop %v809
    %v812 = vmul.f32 %v799, %v810
    %v813 = vmul.f32 %v801, %v811
    %v814 = vmul.f32 %v812, %v459
    %v815 = vmul.f32 %v813, %v460
    %v816 = vmul.f32 %v805, %v810
    %v817 = vmul.f32 %v807, %v811
    %v818 = vmul.f32 %v816, %v773
    %v819 = vmul.f32 %v817, %v774
    %v820 = vadd.f32 %v814, %v818
    %v821 = vadd.f32 %v815, %v819
    %v822 = vld [vmem:[#allocation8] sm:$0xf]
    %v823 = vld [vmem:[#allocation8 + $0x4] sm:$0xf]
    %v824 = vld [vmem:[#allocation10] sm:$0xf]
    %v825 = vld [vmem:[#allocation10 + $0x4] sm:$0xf]
    %v826 = vld [vmem:[#allocation10 + $0x8] sm:$0xf]
    %v827 = vld [vmem:[#allocation10 + $0xc] sm:$0xf]
    %v828 = vpack.c.bf16 %v821, %v820
    %v829 = vld [vmem:[%s9] sm:$0xf]
    %v830 = vld [vmem:[%s9 + $0x4] sm:$0xf]
    %v831 = vld [vmem:[%s9 + $0x8] sm:$0xf]
    %v832 = vld [vmem:[%s9 + $0xc] sm:$0xf]
    %v837 = vunpack.c.l.b16 %v829
    %v838 = vunpack.c.l.b16 %v830
    %v839 = vunpack.c.l.b16 %v831
    %v840 = vunpack.c.l.b16 %v832
    %v841 = vpack.c.b16 %v838, %v837
    %v842 = vpack.c.b16 %v840, %v839
    %v846 = vsel %vm779, %v828, 0
    %848 = vmatprep.subr.bf16.mxu0 0
    %849 = vmatpush1.bf16.msra.mxu0 %v841
    %850 = vmatprep.subr.bf16.mxu0 0
    %851 = vmatpush1.bf16.msra.mxu0 %v842
    %852 = vmatprep.subr.bf16.mxu0 0
    %853 = vmatpush1.bf16.msra.mxu0 0
    %854 = vmatprep.subr.bf16.mxu0 0
    %855 = vmatpush1.bf16.msra.mxu0 0
    %856 = vmatprep.subr.bf16.mxu0 0
    %857 = vmatpush1.bf16.msra.mxu0 0
    %858 = vmatprep.subr.bf16.mxu0 0
    %859 = vmatpush1.bf16.msra.mxu0 0
    %860 = vmatprep.subr.bf16.mxu0 0
    %861 = vmatpush1.bf16.msra.mxu0 0
    %862 = vmatprep.subr.bf16.mxu0 0
    %863 = vmatpush1.bf16.msra.mxu0 0
    %864 = vmatprep.subr.bf16.mxu0 0
    %865 = vmatpush1.bf16.msra.mxu0 0
    %866 = vmatprep.subr.bf16.mxu0 0
    %867 = vmatpush1.bf16.msra.mxu0 0
    %868 = vmatprep.subr.bf16.mxu0 0
    %869 = vmatpush1.bf16.msra.mxu0 0
    %870 = vmatprep.subr.bf16.mxu0 0
    %871 = vmatpush1.bf16.msra.mxu0 0
    %872 = vmatprep.subr.bf16.mxu0 0
    %873 = vmatpush1.bf16.msra.mxu0 0
    %874 = vmatprep.subr.bf16.mxu0 0
    %875 = vmatpush1.bf16.msra.mxu0 0
    %876 = vmatprep.subr.bf16.mxu0 0
    %877 = vmatpush1.bf16.msra.mxu0 0
    %878 = vmatprep.subr.bf16.mxu0 0
    %879 = vmatpush1.bf16.msra.mxu0 0
    %880 = vmatprep.mubr.bf16.mxu0 0
    %881 = vmatmul.mubr.bf16.gmra.mrb[0].mxu0 %v846
    %v882 = vpop.f32.mrb[0].mxu0
    %v883 = vadd.f32 0.0, %v882
    %v884 = vpop.f32.mrb[0].mxu0
    %v885 = vpop.f32.mrb[0].mxu0
    %v886 = vadd.f32 0.0, %v885
    %v887 = vpop.f32.mrb[0].mxu0
    %888 = vdwg.mxu0
    %v891 = vunpack.c.l.b16 %v822
    %v892 = vunpack.c.l.b16 %v823
    %v893 = vpack.c.b16 %v892, %v891
    %v898 = vunpack.c.l.b16 %v824
    %v899 = vunpack.c.l.b16 %v825
    %v900 = vunpack.c.l.b16 %v826
    %v901 = vunpack.c.l.b16 %v827
    %v902 = vpack.c.b16 %v899, %v898
    %v903 = vpack.c.b16 %v901, %v900
    %v907 = vsel %vm779, %v893, 0
    %909 = vmatprep.subr.bf16.mxu0 0
    %910 = vmatpush1.bf16.msra.mxu0 %v902
    %911 = vmatprep.subr.bf16.mxu0 0
    %912 = vmatpush1.bf16.msra.mxu0 %v903
    %913 = vmatprep.subr.bf16.mxu0 0
    %914 = vmatpush1.bf16.msra.mxu0 0
    %915 = vmatprep.subr.bf16.mxu0 0
    %916 = vmatpush1.bf16.msra.mxu0 0
    %917 = vmatprep.subr.bf16.mxu0 0
    %918 = vmatpush1.bf16.msra.mxu0 0
    %919 = vmatprep.subr.bf16.mxu0 0
    %920 = vmatpush1.bf16.msra.mxu0 0
    %921 = vmatprep.subr.bf16.mxu0 0
    %922 = vmatpush1.bf16.msra.mxu0 0
    %923 = vmatprep.subr.bf16.mxu0 0
    %924 = vmatpush1.bf16.msra.mxu0 0
    %925 = vmatprep.subr.bf16.mxu0 0
    %926 = vmatpush1.bf16.msra.mxu0 0
    %927 = vmatprep.subr.bf16.mxu0 0
    %928 = vmatpush1.bf16.msra.mxu0 0
    %929 = vmatprep.subr.bf16.mxu0 0
    %930 = vmatpush1.bf16.msra.mxu0 0
    %931 = vmatprep.subr.bf16.mxu0 0
    %932 = vmatpush1.bf16.msra.mxu0 0
    %933 = vmatprep.subr.bf16.mxu0 0
    %934 = vmatpush1.bf16.msra.mxu0 0
    %935 = vmatprep.subr.bf16.mxu0 0
    %936 = vmatpush1.bf16.msra.mxu0 0
    %937 = vmatprep.subr.bf16.mxu0 0
    %938 = vmatpush1.bf16.msra.mxu0 0
    %939 = vmatprep.subr.bf16.mxu0 0
    %940 = vmatpush1.bf16.msra.mxu0 0
    %941 = vmatprep.mubr.bf16.mxu0 0
    %942 = vmatmul.mubr.bf16.gmra.mrb[0].mxu0 %v907
    %v943 = vpop.f32.mrb[0].mxu0
    %v944 = vadd.f32 %v883, %v943
    %v945 = vpop.f32.mrb[0].mxu0
    %v946 = vpop.f32.mrb[0].mxu0
    %v947 = vadd.f32 %v886, %v946
    %v948 = vpop.f32.mrb[0].mxu0
    %949 = vdwg.mxu0
    %v950 = vld [vmem:[%s10] sm:$0x1]
    %v952 = vlaneseq
    %v953 = vshrl.u32 %v952, 7
    %v954 = vsub.s32 0, %v953
    %v955 = vrot.slane %v950, %v954
    %v957 = vadd.f32 %v944, %v955
    %v958 = vadd.f32 %v947, %v955
    %v959 = vmul.f32 %v957, 0.5
    %v960 = vmul.f32 %v958, 0.5
    %v961 = vmul.f32 %v957, 0.70710677
    %v962 = vmul.f32 %v958, 0.70710677
    %v963 = verf.f32.pop %v961
    %v964 = verf.f32.pop %v962
    %v965 = vadd.f32 %v963, 1.0
    %v966 = vadd.f32 %v964, 1.0
    %v967 = vmul.f32 %v959, %v965
    %v968 = vmul.f32 %v960, %v966
    %969 = vst [vmem:[#allocation11] sm:$0xff] %v967
    %970 = vst [vmem:[#allocation11 + $0x8] sm:$0xff] %v968
    // Predicated region
    $region66: #{tpu_custom_call.1} parent=1 // pred_check
      _
    $region67: #{tpu_custom_call.1} parent=1 // pred_check_branch
      %972 = sbr.rel (0) target = $region69
    $region68: #{tpu_custom_call.1} parent=1 // pred_region
      %s974 = ssub.s32 256, 256
      %975 = vsyncadd [#allocation4], %s974
      %s976 = sshll.u32 [#allocation11], 4
      %s977 = int_to_ptr.vmem [resolvable:$true] %s976
      %982 = dma.vmem_to_hbm [thread:$0]  %s977, 256, %s11, [#allocation4], 128, 128, 8
    $region69: #{tpu_custom_call.1} parent=1 // pred_fallthru
      _
    // Predicated region
    $region70: #{tpu_custom_call.1} parent=1 // pred_check
      _
    $region71: #{tpu_custom_call.1} parent=1 // pred_check_branch
      %984 = sbr.rel (0) target = $region73
    $region72: #{tpu_custom_call.1} parent=1 // pred_region
      %985 = dma.done [#allocation4], 256
    $region73: #{tpu_custom_call.1} parent=1 // pred_fallthru
      _
    %986 = vsyncpa [#allocation3], 1
    %987 = vsyncpa [#allocation6], 1
    %988 = vsyncpa [#allocation9], 1
    %989 = vsyncpa [#allocation4], 1

</llo_original>
